<compile_context>
chip_gen: v7x
topology: tpu7x:2x2x1
jax: 0.10.0
libtpu: 0.0.40
codegen_flags: <defaults>
</compile_context>

<pallas_src>
from functools import partial

import jax
import jax.numpy as jnp
from jax.experimental import pallas as pl
from jax.experimental.pallas import tpu as pltpu


def _round_up(x, m):
    return (x + m - 1) // m * m


def _pick_h_tile(ho, target=8):
    # Largest divisor of `ho` that is <= target (blocks tile exactly; the test
    # shape gives h_tile=8, HB=2 so the pipelined grid is actually exercised).
    for t in range(min(target, ho), 0, -1):
        if ho % t == 0:
            return t
    return 1


def _conv_stats_kernel(x_ref, w_ref, b_ref, y_ref, s_ref, *, KH, KW):
    """One (batch, row-block) tile: conv KHxKW + bias and per-tile BN partials.

    x_ref : (1, 1, h_tile+KH-1, Wp, Cinp)  bf16 halo'd input rows
    w_ref : (KH*KW*Cinp, Cp)               bf16 tap-major weight matrix
    b_ref : (1, Cp)                        f32 conv bias
    y_ref : (1, h_tile, Wo, Cp)            f32 conv+bias output
    s_ref : (1, 1, 2, Cp)                  f32 [sum, sum_sq] channel partials
    """
    _, _, _, _, cinp = x_ref.shape
    _, h_tile, wo, cp = y_ref.shape

    # im2col inside the tile: KH*KW shifted taps concatenated on the channel
    # (lane) axis -> a single MXU dot with contraction K = KH*KW*Cinp.
    taps = []
    for kh in range(KH):
        for kw in range(KW):
            taps.append(x_ref[0, 0, kh:kh + h_tile, kw:kw + wo, :])
    p = jnp.concatenate(taps, axis=-1).reshape(h_tile * wo, KH * KW * cinp)

    # bf16 x bf16 -> f32 accumulate (native MXU rate; no Precision.HIGHEST).
    y = jnp.dot(p, w_ref[...], preferred_element_type=jnp.float32)
    y = y + b_ref[...]                                      # (h_tile*wo, Cp)

    y_ref[...] = y.reshape(1, h_tile, wo, cp)

    # BN partials in the conv epilogue (VPU work hidden under the MXU drain,
    # and no second full read of y for the statistics).
    s_sum = jnp.sum(y, axis=0, keepdims=True)               # (1, Cp)
    s_sq = jnp.sum(y * y, axis=0, keepdims=True)            # (1, Cp)
    s_ref[0, 0] = jnp.concatenate([s_sum, s_sq], axis=0)    # (2, Cp)


def _bn_relu_kernel(y_ref, scale_ref, shift_ref, o_ref):
    # y_ref/o_ref: (1, h_tile, Wo, Cp); scale/shift: (1, Cp), f32 elementwise.
    o_ref[...] = jnp.maximum(y_ref[...] * scale_ref[...] + shift_ref[...], 0.0)


def cbr2d_forward(x_nchw, weight_oihw, bias, gamma, beta, *, padding=1, eps=1e-5):
    """Forward pass matching PyTorch CBR2d (module in default training mode)."""
    N, Cin, H, W = x_nchw.shape
    Cout, _, KH, KW = weight_oihw.shape

    Cinp = _round_up(Cin, 8)            # sublane-friendly input-channel pad
    Cp = _round_up(Cout, 128)           # lane-dense output channels
    Hp, Wp = H + 2 * padding, W + 2 * padding
    Ho, Wo = Hp - (KH - 1), Wp - (KW - 1)            # stride = 1
    h_tile = _pick_h_tile(Ho)
    HB = Ho // h_tile
    Hb = h_tile + KH - 1                              # rows incl. halo

    # ---- glue: NCHW->NHWC, zero pad, channel pad, halo'd H-row blocks, bf16 ----
    # TODO(synk): fold the zero padding / halo rows into the kernel with masked
    # edge taps instead of materializing the blocked (bf16) copy in HBM.
    x = jnp.transpose(x_nchw, (0, 2, 3, 1)).astype(jnp.float32)
    x = jnp.pad(x, ((0, 0), (padding, padding), (padding, padding), (0, Cinp - Cin)))
    xblk = jnp.stack(
        [x[:, i * h_tile:i * h_tile + Hb] for i in range(HB)], axis=1
    ).astype(jnp.bfloat16)                            # (N, HB, Hb, Wp, Cinp)

    w = jnp.transpose(weight_oihw, (2, 3, 1, 0)).astype(jnp.float32)  # (KH,KW,Cin,Cout)
    w = jnp.pad(w, ((0, 0), (0, 0), (0, Cinp - Cin), (0, Cp - Cout)))
    wmat = w.reshape(KH * KW * Cinp, Cp).astype(jnp.bfloat16)
    b = jnp.pad(bias.astype(jnp.float32), (0, Cp - Cout)).reshape(1, Cp)
    g = jnp.pad(gamma.astype(jnp.float32), (0, Cp - Cout)).reshape(1, Cp)
    bt = jnp.pad(beta.astype(jnp.float32), (0, Cp - Cout)).reshape(1, Cp)

    cparams = pltpu.CompilerParams(
        dimension_semantics=("parallel", "parallel"),  # shard (n, h-block) across TCs
        vmem_limit_bytes=48 * 1024 * 1024,             # explicit, < v7x 64 MiB physical
    )

    # ---- pass 1: conv + bias + per-tile BN partials ----
    y, stats = pl.pallas_call(
        partial(_conv_stats_kernel, KH=KH, KW=KW),
        out_shape=(
            jax.ShapeDtypeStruct((N, Ho, Wo, Cp), jnp.float32),
            jax.ShapeDtypeStruct((N, HB, 2, Cp), jnp.float32),
        ),
        grid=(N, HB),
        in_specs=[
            pl.BlockSpec((1, 1, Hb, Wp, Cinp), lambda n, hb: (n, hb, 0, 0, 0)),
            pl.BlockSpec((KH * KW * Cinp, Cp), lambda n, hb: (0, 0)),
            pl.BlockSpec((1, Cp), lambda n, hb: (0, 0)),
        ],
        out_specs=(
            pl.BlockSpec((1, h_tile, Wo, Cp), lambda n, hb: (n, hb, 0, 0)),
            pl.BlockSpec((1, 1, 2, Cp), lambda n, hb: (n, hb, 0, 0)),
        ),
        compiler_params=cparams,
    )(xblk, wmat, b)

    # ---- finalize BN (training-mode biased batch stats) from tiny partials ----
    cnt = float(N * Ho * Wo)
    s_sum = jnp.sum(stats[:, :, 0, :], axis=(0, 1))        # (Cp,)
    s_sq = jnp.sum(stats[:, :, 1, :], axis=(0, 1))         # (Cp,)
    mean = s_sum / cnt
    var = jnp.maximum(s_sq / cnt - mean * mean, 0.0)
    inv = jax.lax.rsqrt(var + eps)
    scale = (g[0] * inv).reshape(1, Cp)
    shift = (bt[0] - mean * g[0] * inv).reshape(1, Cp)

    # ---- pass 2: normalize + ReLU (y buffer aliased into the output) ----
    out = pl.pallas_call(
        _bn_relu_kernel,
        out_shape=jax.ShapeDtypeStruct((N, Ho, Wo, Cp), jnp.float32),
        grid=(N, HB),
        in_specs=[
            pl.BlockSpec((1, h_tile, Wo, Cp), lambda n, hb: (n, hb, 0, 0)),
            pl.BlockSpec((1, Cp), lambda n, hb: (0, 0)),
            pl.BlockSpec((1, Cp), lambda n, hb: (0, 0)),
        ],
        out_specs=pl.BlockSpec((1, h_tile, Wo, Cp), lambda n, hb: (n, hb, 0, 0)),
        compiler_params=cparams,
        input_output_aliases={0: 0},
    )(y, scale, shift)

    out = out[..., :Cout]                                  # drop channel pad
    return jnp.transpose(out, (0, 3, 1, 2))                # NHWC -> NCHW


def _reference(x, weight, bias, gamma, beta, eps=1e-5):
    # Matches the kernel's bf16 MXU inputs (f32 accumulate) for the conv; BN
    # and ReLU are done in f32 like the kernel.
    xq = x.astype(jnp.bfloat16).astype(jnp.float32)
    wq = weight.astype(jnp.bfloat16).astype(jnp.float32)
    y = jax.lax.conv_general_dilated(
        xq, wq, window_strides=(1, 1), padding=((1, 1), (1, 1)),
        dimension_numbers=("NCHW", "OIHW", "NCHW"),
        precision=jax.lax.Precision.HIGHEST,
    ) + bias.reshape(1, -1, 1, 1)
    mean = jnp.mean(y, axis=(0, 2, 3), keepdims=True)
    var = jnp.mean((y - mean) ** 2, axis=(0, 2, 3), keepdims=True)
    yn = (y - mean) / jnp.sqrt(var + eps)
    yn = yn * gamma.reshape(1, -1, 1, 1) + beta.reshape(1, -1, 1, 1)
    return jnp.maximum(yn, 0.0)


if __name__ == "__main__":
    key = jax.random.PRNGKey(0)
    k_x, k_w, k_b = jax.random.split(key, 3)

    N, Cin, H, W = 2, 4, 16, 16
    Cout, KH, KW = 8, 3, 3

    x = jax.random.normal(k_x, (N, Cin, H, W), dtype=jnp.float32)

    # Kaiming normal (fan_in, relu): std = sqrt(2 / (Cin*KH*KW))
    fan_in = Cin * KH * KW
    w_std = (2.0 / fan_in) ** 0.5
    weight = jax.random.normal(k_w, (Cout, Cin, KH, KW), dtype=jnp.float32) * w_std
    # Conv2d default bias init: U(-1/sqrt(fan_in), 1/sqrt(fan_in))
    bound = 1.0 / (fan_in ** 0.5)
    bias = jax.random.uniform(k_b, (Cout,), minval=-bound, maxval=bound,
                              dtype=jnp.float32)
    # BatchNorm2d default affine init
    gamma = jnp.ones((Cout,), jnp.float32)
    beta = jnp.zeros((Cout,), jnp.float32)

    fwd = jax.jit(cbr2d_forward)
    out = jax.block_until_ready(fwd(x, weight, bias, gamma, beta))

    ref = _reference(x, weight, bias, gamma, beta)
    assert out.shape == (N, Cout, H, W)
    err = float(jnp.max(jnp.abs(out - ref)))
    assert jnp.allclose(out, ref, atol=2e-4, rtol=2e-4), f"max abs err {err}"

    print("KERNEL_OK")
</pallas_src>

<mosaic_0001>
module attributes {stable_mosaic.version = 11 : i64} {
  func.func @_conv_stats_kernel(%arg0: i32, %arg1: i32, %arg2: memref<1x1x10x18x8xbf16, #tpu.memory_space<vmem>>, %arg3: memref<72x128xbf16, #tpu.memory_space<vmem>>, %arg4: memref<1x128xf32, #tpu.memory_space<vmem>>, %arg5: memref<1x8x16x128xf32, #tpu.memory_space<vmem>>, %arg6: memref<1x1x2x128xf32, #tpu.memory_space<vmem>>) attributes {dimension_semantics = [#tpu.dimension_semantics<parallel>, #tpu.dimension_semantics<parallel>], iteration_bounds = array<i64: 2, 2>, scalar_prefetch = 0 : i64, scratch_operands = 0 : i64, tpu.core_type = #tpu.core_type<tc>, window_params = [{transform_indices = @transform_0, window_bounds = array<i64: 1, 1, 10, 18, 8>}, {pipeline_mode = #tpu.pipeline_mode<synchronous>, transform_indices = @transform_1, window_bounds = array<i64: 72, 128>}, {pipeline_mode = #tpu.pipeline_mode<synchronous>, transform_indices = @transform_2, window_bounds = array<i64: 1, 128>}, {transform_indices = @transform_3, window_bounds = array<i64: 1, 8, 16, 128>}, {transform_indices = @transform_4, window_bounds = array<i64: 1, 1, 2, 128>}]} {
    %c0 = arith.constant 0 : index
    %c0_0 = arith.constant 0 : index
    %c0_1 = arith.constant 0 : index
    %c0_2 = arith.constant 0 : index
    %c0_3 = arith.constant 0 : index
    %0 = vector.load %arg2[%c0, %c0_0, %c0_1, %c0_2, %c0_3] : memref<1x1x10x18x8xbf16, #tpu.memory_space<vmem>>, vector<1x1x8x16x8xbf16>
    %1 = vector.shape_cast %0 : vector<1x1x8x16x8xbf16> to vector<8x16x8xbf16>
    %c0_4 = arith.constant 0 : index
    %c0_5 = arith.constant 0 : index
    %c0_6 = arith.constant 0 : index
    %c1 = arith.constant 1 : index
    %c0_7 = arith.constant 0 : index
    %2 = vector.load %arg2[%c0_4, %c0_5, %c0_6, %c1, %c0_7] : memref<1x1x10x18x8xbf16, #tpu.memory_space<vmem>>, vector<1x1x8x16x8xbf16>
    %3 = vector.shape_cast %2 : vector<1x1x8x16x8xbf16> to vector<8x16x8xbf16>
    %c0_8 = arith.constant 0 : index
    %c0_9 = arith.constant 0 : index
    %c0_10 = arith.constant 0 : index
    %c2 = arith.constant 2 : index
    %c0_11 = arith.constant 0 : index
    %4 = vector.load %arg2[%c0_8, %c0_9, %c0_10, %c2, %c0_11] : memref<1x1x10x18x8xbf16, #tpu.memory_space<vmem>>, vector<1x1x8x16x8xbf16>
    %5 = vector.shape_cast %4 : vector<1x1x8x16x8xbf16> to vector<8x16x8xbf16>
    %c0_12 = arith.constant 0 : index
    %c0_13 = arith.constant 0 : index
    %c1_14 = arith.constant 1 : index
    %c0_15 = arith.constant 0 : index
    %c0_16 = arith.constant 0 : index
    %6 = vector.load %arg2[%c0_12, %c0_13, %c1_14, %c0_15, %c0_16] : memref<1x1x10x18x8xbf16, #tpu.memory_space<vmem>>, vector<1x1x8x16x8xbf16>
    %7 = vector.shape_cast %6 : vector<1x1x8x16x8xbf16> to vector<8x16x8xbf16>
    %c0_17 = arith.constant 0 : index
    %c0_18 = arith.constant 0 : index
    %c1_19 = arith.constant 1 : index
    %c1_20 = arith.constant 1 : index
    %c0_21 = arith.constant 0 : index
    %8 = vector.load %arg2[%c0_17, %c0_18, %c1_19, %c1_20, %c0_21] : memref<1x1x10x18x8xbf16, #tpu.memory_space<vmem>>, vector<1x1x8x16x8xbf16>
    %9 = vector.shape_cast %8 : vector<1x1x8x16x8xbf16> to vector<8x16x8xbf16>
    %c0_22 = arith.constant 0 : index
    %c0_23 = arith.constant 0 : index
    %c1_24 = arith.constant 1 : index
    %c2_25 = arith.constant 2 : index
    %c0_26 = arith.constant 0 : index
    %10 = vector.load %arg2[%c0_22, %c0_23, %c1_24, %c2_25, %c0_26] : memref<1x1x10x18x8xbf16, #tpu.memory_space<vmem>>, vector<1x1x8x16x8xbf16>
    %11 = vector.shape_cast %10 : vector<1x1x8x16x8xbf16> to vector<8x16x8xbf16>
    %c0_27 = arith.constant 0 : index
    %c0_28 = arith.constant 0 : index
    %c2_29 = arith.constant 2 : index
    %c0_30 = arith.constant 0 : index
    %c0_31 = arith.constant 0 : index
    %12 = vector.load %arg2[%c0_27, %c0_28, %c2_29, %c0_30, %c0_31] : memref<1x1x10x18x8xbf16, #tpu.memory_space<vmem>>, vector<1x1x8x16x8xbf16>
    %13 = vector.shape_cast %12 : vector<1x1x8x16x8xbf16> to vector<8x16x8xbf16>
    %c0_32 = arith.constant 0 : index
    %c0_33 = arith.constant 0 : index
    %c2_34 = arith.constant 2 : index
    %c1_35 = arith.constant 1 : index
    %c0_36 = arith.constant 0 : index
    %14 = vector.load %arg2[%c0_32, %c0_33, %c2_34, %c1_35, %c0_36] : memref<1x1x10x18x8xbf16, #tpu.memory_space<vmem>>, vector<1x1x8x16x8xbf16>
    %15 = vector.shape_cast %14 : vector<1x1x8x16x8xbf16> to vector<8x16x8xbf16>
    %c0_37 = arith.constant 0 : index
    %c0_38 = arith.constant 0 : index
    %c2_39 = arith.constant 2 : index
    %c2_40 = arith.constant 2 : index
    %c0_41 = arith.constant 0 : index
    %16 = vector.load %arg2[%c0_37, %c0_38, %c2_39, %c2_40, %c0_41] : memref<1x1x10x18x8xbf16, #tpu.memory_space<vmem>>, vector<1x1x8x16x8xbf16>
    %17 = vector.shape_cast %16 : vector<1x1x8x16x8xbf16> to vector<8x16x8xbf16>
    %18 = tpu.concatenate %1, %3, %5, %7, %9, %11, %13, %15, %17 in 2 : vector<8x16x8xbf16>, vector<8x16x8xbf16>, vector<8x16x8xbf16>, vector<8x16x8xbf16>, vector<8x16x8xbf16>, vector<8x16x8xbf16>, vector<8x16x8xbf16>, vector<8x16x8xbf16>, vector<8x16x8xbf16> -> vector<8x16x72xbf16>
    %19 = vector.shape_cast %18 : vector<8x16x72xbf16> to vector<128x72xbf16>
    %c0_42 = arith.constant 0 : index
    %c0_43 = arith.constant 0 : index
    %20 = vector.load %arg3[%c0_42, %c0_43] : memref<72x128xbf16, #tpu.memory_space<vmem>>, vector<72x128xbf16>
    %cst = arith.constant dense<0.000000e+00> : vector<128x128xf32>
    %21 = tpu.matmul %19, %20, %cst {dimension_numbers = #tpu.dot_dimension_numbers<[1], [0], [0], [1], [0, 0, 1, 1], [], []>} : vector<128x72xbf16>, vector<72x128xbf16>, vector<128x128xf32> -> vector<128x128xf32>
    %c0_44 = arith.constant 0 : index
    %c0_45 = arith.constant 0 : index
    %22 = vector.load %arg4[%c0_44, %c0_45] : memref<1x128xf32, #tpu.memory_space<vmem>>, vector<1x128xf32>
    %23 = vector.broadcast %22 : vector<1x128xf32> to vector<128x128xf32>
    %24 = arith.addf %21, %23 : vector<128x128xf32>
    %25 = vector.shape_cast %24 : vector<128x128xf32> to vector<1x8x16x128xf32>
    %c0_46 = arith.constant 0 : index
    %c0_47 = arith.constant 0 : index
    %c0_48 = arith.constant 0 : index
    %c0_49 = arith.constant 0 : index
    %26 = vector.load %arg5[%c0_46, %c0_47, %c0_48, %c0_49] : memref<1x8x16x128xf32, #tpu.memory_space<vmem>>, vector<1x8x16x128xf32>
    tpu.vector_store %arg5[%c0_46, %c0_47, %c0_48, %c0_49], %25 {strides = array<i32>} : memref<1x8x16x128xf32, #tpu.memory_space<vmem>>, vector<1x8x16x128xf32>,
    %cst_50 = arith.constant dense<0.000000e+00> : vector<128xf32>
    %27 = vector.multi_reduction <add>, %24, %cst_50 [0] : vector<128x128xf32> to vector<128xf32>
    %28 = vector.shape_cast %27 : vector<128xf32> to vector<1x128xf32>
    %29 = arith.mulf %24, %24 : vector<128x128xf32>
    %cst_51 = arith.constant dense<0.000000e+00> : vector<128xf32>
    %30 = vector.multi_reduction <add>, %29, %cst_51 [0] : vector<128x128xf32> to vector<128xf32>
    %31 = vector.shape_cast %30 : vector<128xf32> to vector<1x128xf32>
    %32 = tpu.concatenate %28, %31 in 0 : vector<1x128xf32>, vector<1x128xf32> -> vector<2x128xf32>
    %c0_52 = arith.constant 0 : index
    %c0_53 = arith.constant 0 : index
    %c0_54 = arith.constant 0 : index
    %c0_55 = arith.constant 0 : index
    %33 = vector.load %arg6[%c0_52, %c0_53, %c0_54, %c0_55] : memref<1x1x2x128xf32, #tpu.memory_space<vmem>>, vector<1x1x2x128xf32>
    %34 = vector.shape_cast %33 : vector<1x1x2x128xf32> to vector<2x128xf32>
    %35 = vector.shape_cast %32 : vector<2x128xf32> to vector<1x1x2x128xf32>
    tpu.vector_store %arg6[%c0_52, %c0_53, %c0_54, %c0_55], %35 {strides = array<i32>} : memref<1x1x2x128xf32, #tpu.memory_space<vmem>>, vector<1x1x2x128xf32>,
    return
  }
  func.func @transform_0(%arg0: i32, %arg1: i32) -> (i32, i32, i32, i32, i32) {
    %c0_i32 = arith.constant 0 : i32
    %c0_i32_0 = arith.constant 0 : i32
    %c0_i32_1 = arith.constant 0 : i32
    %c0_i32_2 = arith.constant 0 : i32
    return %arg0, %arg1, %c0_i32, %c0_i32_0, %c0_i32_1 : i32, i32, i32, i32, i32
  }
  func.func @transform_1(%arg0: i32, %arg1: i32) -> (i32, i32) {
    %c0_i32 = arith.constant 0 : i32
    %c0_i32_0 = arith.constant 0 : i32
    %c0_i32_1 = arith.constant 0 : i32
    return %c0_i32, %c0_i32_0 : i32, i32
  }
  func.func @transform_2(%arg0: i32, %arg1: i32) -> (i32, i32) {
    %c0_i32 = arith.constant 0 : i32
    %c0_i32_0 = arith.constant 0 : i32
    %c0_i32_1 = arith.constant 0 : i32
    return %c0_i32, %c0_i32_0 : i32, i32
  }
  func.func @transform_3(%arg0: i32, %arg1: i32) -> (i32, i32, i32, i32) {
    %c0_i32 = arith.constant 0 : i32
    %c0_i32_0 = arith.constant 0 : i32
    %c0_i32_1 = arith.constant 0 : i32
    return %arg0, %arg1, %c0_i32, %c0_i32_0 : i32, i32, i32, i32
  }
  func.func @transform_4(%arg0: i32, %arg1: i32) -> (i32, i32, i32, i32) {
    %c0_i32 = arith.constant 0 : i32
    %c0_i32_0 = arith.constant 0 : i32
    %c0_i32_1 = arith.constant 0 : i32
    return %arg0, %arg1, %c0_i32, %c0_i32_0 : i32, i32, i32, i32
  }
}

module attributes {stable_mosaic.version = 11 : i64} {
  func.func @_bn_relu_kernel(%arg0: i32, %arg1: i32, %arg2: memref<1x8x16x128xf32, #tpu.memory_space<vmem>>, %arg3: memref<1x128xf32, #tpu.memory_space<vmem>>, %arg4: memref<1x128xf32, #tpu.memory_space<vmem>>, %arg5: memref<1x8x16x128xf32, #tpu.memory_space<vmem>>) attributes {dimension_semantics = [#tpu.dimension_semantics<parallel>, #tpu.dimension_semantics<parallel>], iteration_bounds = array<i64: 2, 2>, scalar_prefetch = 0 : i64, scratch_operands = 0 : i64, tpu.core_type = #tpu.core_type<tc>, window_params = [{transform_indices = @transform_0, window_bounds = array<i64: 1, 8, 16, 128>}, {pipeline_mode = #tpu.pipeline_mode<synchronous>, transform_indices = @transform_1, window_bounds = array<i64: 1, 128>}, {pipeline_mode = #tpu.pipeline_mode<synchronous>, transform_indices = @transform_2, window_bounds = array<i64: 1, 128>}, {transform_indices = @transform_3, window_bounds = array<i64: 1, 8, 16, 128>}]} {
    %c0 = arith.constant 0 : index
    %c0_0 = arith.constant 0 : index
    %c0_1 = arith.constant 0 : index
    %c0_2 = arith.constant 0 : index
    %0 = vector.load %arg2[%c0, %c0_0, %c0_1, %c0_2] : memref<1x8x16x128xf32, #tpu.memory_space<vmem>>, vector<1x8x16x128xf32>
    %c0_3 = arith.constant 0 : index
    %c0_4 = arith.constant 0 : index
    %1 = vector.load %arg3[%c0_3, %c0_4] : memref<1x128xf32, #tpu.memory_space<vmem>>, vector<1x128xf32>
    %2 = vector.shape_cast %1 : vector<1x128xf32> to vector<1x1x1x128xf32>
    %3 = vector.broadcast %2 : vector<1x1x1x128xf32> to vector<1x8x16x128xf32>
    %4 = arith.mulf %0, %3 : vector<1x8x16x128xf32>
    %c0_5 = arith.constant 0 : index
    %c0_6 = arith.constant 0 : index
    %5 = vector.load %arg4[%c0_5, %c0_6] : memref<1x128xf32, #tpu.memory_space<vmem>>, vector<1x128xf32>
    %6 = vector.shape_cast %5 : vector<1x128xf32> to vector<1x1x1x128xf32>
    %7 = vector.broadcast %6 : vector<1x1x1x128xf32> to vector<1x8x16x128xf32>
    %8 = arith.addf %4, %7 : vector<1x8x16x128xf32>
    %cst = arith.constant 0.000000e+00 : f32
    %9 = vector.broadcast %cst : f32 to vector<1x8x16x128xf32>
    %10 = arith.maximumf %8, %9 : vector<1x8x16x128xf32>
    %c0_7 = arith.constant 0 : index
    %c0_8 = arith.constant 0 : index
    %c0_9 = arith.constant 0 : index
    %c0_10 = arith.constant 0 : index
    %11 = vector.load %arg5[%c0_7, %c0_8, %c0_9, %c0_10] : memref<1x8x16x128xf32, #tpu.memory_space<vmem>>, vector<1x8x16x128xf32>
    tpu.vector_store %arg5[%c0_7, %c0_8, %c0_9, %c0_10], %10 {strides = array<i32>} : memref<1x8x16x128xf32, #tpu.memory_space<vmem>>, vector<1x8x16x128xf32>,
    return
  }
  func.func @transform_0(%arg0: i32, %arg1: i32) -> (i32, i32, i32, i32) {
    %c0_i32 = arith.constant 0 : i32
    %c0_i32_0 = arith.constant 0 : i32
    %c0_i32_1 = arith.constant 0 : i32
    return %arg0, %arg1, %c0_i32, %c0_i32_0 : i32, i32, i32, i32
  }
  func.func @transform_1(%arg0: i32, %arg1: i32) -> (i32, i32) {
    %c0_i32 = arith.constant 0 : i32
    %c0_i32_0 = arith.constant 0 : i32
    %c0_i32_1 = arith.constant 0 : i32
    return %c0_i32, %c0_i32_0 : i32, i32
  }
  func.func @transform_2(%arg0: i32, %arg1: i32) -> (i32, i32) {
    %c0_i32 = arith.constant 0 : i32
    %c0_i32_0 = arith.constant 0 : i32
    %c0_i32_1 = arith.constant 0 : i32
    return %c0_i32, %c0_i32_0 : i32, i32
  }
  func.func @transform_3(%arg0: i32, %arg1: i32) -> (i32, i32, i32, i32) {
    %c0_i32 = arith.constant 0 : i32
    %c0_i32_0 = arith.constant 0 : i32
    %c0_i32_1 = arith.constant 0 : i32
    return %arg0, %arg1, %c0_i32, %c0_i32_0 : i32, i32, i32, i32
  }
}

</mosaic_0001>

<llo_original>
// kernel: cbr2d_forward.3
$region0: #{cbr2d_forward.3}
  #allocation0 [shape = 'u32[]', space=smem, size = 0x4, offset = 0x4, fixed_abs, tag = 'smem constant byte address 0x4 - core index']
  #allocation1 [shape = 'u32[144,128]{1,0:T(1,128)}', space=vmem, size = 0x12000, scoped, tag = 'internal scratch']
  %s0 = inlined_call_operand.vmem [shape: f32[2,16,16,128], index: 0, kind: input, shape index: {}, may-alias: {0,3}]
  %s1 = inlined_call_operand.vmem [shape: f32[1,128], index: 1, kind: input, shape index: {}]
  %s2 = inlined_call_operand.vmem [shape: f32[1,128], index: 2, kind: input, shape index: {}]
  %s3 = inlined_call_operand.vmem [shape: f32[2,16,16,128], index: 3, kind: output, shape index: {}, may-alias: {0,3}]
  %s4 = sld [smem:[#allocation0]]
  $region45: #{cbr2d_forward.3} parent=0
    _
  %s6 = ssub.s32 1, %s4
  %s7 = scalar_select 0, %s6, %s4
  loop: start=0, step=1, limit=6
  $region2: #{cbr2d_forward.3} parent=0 // loop_pre_header
    _
  $region3: #{cbr2d_forward.3} parent=0 // loop_header
    %s9 = sphi 0, %s13
    %p10 = scmp.ge.s32.totalorder %s9, 6
    %s16 = sphi 0, %s28
    %s17 = sphi 0, %s24
    %s18 = sphi 0, %s16
    %s19 = sphi 0, %s17
    %s20 = sphi 0, %s18
    %s21 = sphi 0, %s19
    %s33 = sphi 0, %s35
    %s36 = sphi 0, %s33
    %s37 = sphi 0, %s36
    %s53 = sphi 0, %s37
    %s57 = sphi 0, %s57
    %s59 = sphi 0, %s57
    %s60 = sphi 0, %s59
    %s74 = sphi 0, %s60
    %s78 = sphi 0, %s78
    %s80 = sphi 0, %s78
    %s81 = sphi 0, %s80
    %s95 = sphi 0, %s81
    %s103 = sphi 0, %s105
    %s106 = sphi 0, %s103
    %s107 = sphi 0, %s106
    %s123 = sphi 0, %s107
  $region4: #{cbr2d_forward.3} parent=0 // loop_header_branch
    %12 = sbr.rel (%p10) target = $region8
  $region5: #{cbr2d_forward.3} parent=0 // loop_body
    %s14 = ssub.s32 %s9, 1
    %s15 = ssub.s32 %s9, 2
    %s22 = sadd.s32 1, %s17
    %p23 = scmp.ge.s32.totalorder %s22, 2
    %s24 = scalar_select %p23, 0, %s22
    %s25 = sadd.s32 1, %s16
    %s26 = scalar_select %p23, %s25, %s16
    %p27 = scmp.ge.s32.totalorder %s26, 2
    %s28 = scalar_select %p27, 0, %s26
    %s29 = ssub.s32 %s16, %s28
    %s30 = ssub.s32 %s17, %s24
    %s31 = sor.u32 %s29, %s30
    %p32 = scmp.eq.s32.totalorder %s31, 0
    %s34 = sadd.s32 %s33, 1
    %s35 = scalar_select %p32, %s33, %s34
    %p38 = pneg %p32
    %p39 = scmp.eq.s32.totalorder %s9, 3
    %p40 = por %p38, %p39
    %p41 = scmp.ne.s32.totalorder %s33, %s36
    %p42 = scmp.eq.s32.totalorder %s9, 0
    %p43 = por %p41, %p42
    %p44 = scmp.ne.s32.totalorder %s33, %s36
    %p45 = scmp.eq.s32.totalorder %s14, 3
    %p46 = por %p44, %p45
    %p47 = scmp.ne.s32.totalorder %s36, %s37
    %p48 = scmp.eq.s32.totalorder %s14, 0
    %p49 = por %p47, %p48
    %p50 = scmp.ne.s32.totalorder %s36, %s37
    %p51 = scmp.eq.s32.totalorder %s15, 3
    %p52 = por %p50, %p51
    %p54 = scmp.ne.s32.totalorder %s37, %s53
    %p55 = scmp.eq.s32.totalorder %s15, 0
    %p56 = por %p54, %p55
    %s58 = sadd.s32 %s57, 1
    %p61 = scmp.eq.s32.totalorder %s9, 3
    %p62 = scmp.ne.s32.totalorder %s57, %s59
    %p63 = scmp.eq.s32.totalorder %s9, 0
    %p64 = por %p62, %p63
    %p65 = scmp.ne.s32.totalorder %s57, %s59
    %p66 = scmp.eq.s32.totalorder %s14, 3
    %p67 = por %p65, %p66
    %p68 = scmp.ne.s32.totalorder %s59, %s60
    %p69 = scmp.eq.s32.totalorder %s14, 0
    %p70 = por %p68, %p69
    %p71 = scmp.ne.s32.totalorder %s59, %s60
    %p72 = scmp.eq.s32.totalorder %s15, 3
    %p73 = por %p71, %p72
    %p75 = scmp.ne.s32.totalorder %s60, %s74
    %p76 = scmp.eq.s32.totalorder %s15, 0
    %p77 = por %p75, %p76
    %s79 = sadd.s32 %s78, 1
    %p82 = scmp.eq.s32.totalorder %s9, 3
    %p83 = scmp.ne.s32.totalorder %s78, %s80
    %p84 = scmp.eq.s32.totalorder %s9, 0
    %p85 = por %p83, %p84
    %p86 = scmp.ne.s32.totalorder %s78, %s80
    %p87 = scmp.eq.s32.totalorder %s14, 3
    %p88 = por %p86, %p87
    %p89 = scmp.ne.s32.totalorder %s80, %s81
    %p90 = scmp.eq.s32.totalorder %s14, 0
    %p91 = por %p89, %p90
    %p92 = scmp.ne.s32.totalorder %s80, %s81
    %p93 = scmp.eq.s32.totalorder %s15, 3
    %p94 = por %p92, %p93
    %p96 = scmp.ne.s32.totalorder %s81, %s95
    %p97 = scmp.eq.s32.totalorder %s15, 0
    %p98 = por %p96, %p97
    %s99 = ssub.s32 %s16, %s28
    %s100 = ssub.s32 %s17, %s24
    %s101 = sor.u32 %s99, %s100
    %p102 = scmp.eq.s32.totalorder %s101, 0
    %s104 = sadd.s32 %s103, 1
    %s105 = scalar_select %p102, %s103, %s104
    %p108 = pneg %p102
    %p109 = scmp.eq.s32.totalorder %s9, 3
    %p110 = por %p108, %p109
    %p111 = scmp.ne.s32.totalorder %s103, %s106
    %p112 = scmp.eq.s32.totalorder %s9, 0
    %p113 = por %p111, %p112
    %p114 = scmp.ne.s32.totalorder %s103, %s106
    %p115 = scmp.eq.s32.totalorder %s14, 3
    %p116 = por %p114, %p115
    %p117 = scmp.ne.s32.totalorder %s106, %s107
    %p118 = scmp.eq.s32.totalorder %s14, 0
    %p119 = por %p117, %p118
    %p120 = scmp.ne.s32.totalorder %s106, %s107
    %p121 = scmp.eq.s32.totalorder %s15, 3
    %p122 = por %p120, %p121
    %p124 = scmp.ne.s32.totalorder %s107, %s123
    %p125 = scmp.eq.s32.totalorder %s15, 0
    %p126 = por %p124, %p125
    %p127 = scmp.le.s32.totalorder 1, %s9
    %p128 = scmp.lt.s32.totalorder %s9, 5
    %p129 = pnand %p127, %p128
    %p130 = pneg %p129
    // Predicated region
    $region9: #{cbr2d_forward.3} parent=5 // pred_check
      _
    $region10: #{cbr2d_forward.3} parent=5 // pred_check_branch
      %132 = sbr.rel (%p129) target = $region12
    $region11: #{cbr2d_forward.3} parent=5 // pred_region
      %s133 = ssub.s32 %s9, 1
      // Predicated region
      $region13: #{cbr2d_forward.3} parent=11 // pred_check
        %p134 = pneg %p70
      $region14: #{cbr2d_forward.3} parent=11 // pred_check_branch
        %136 = sbr.rel (%p134) target = $region16
      $region15: #{cbr2d_forward.3} parent=11 // pred_region
        _
      $region16: #{cbr2d_forward.3} parent=11 // pred_fallthru
        _
      // Predicated region
      $region17: #{cbr2d_forward.3} parent=11 // pred_check
        %p137 = pneg %p91
      $region18: #{cbr2d_forward.3} parent=11 // pred_check_branch
        %139 = sbr.rel (%p137) target = $region20
      $region19: #{cbr2d_forward.3} parent=11 // pred_region
        _
      $region20: #{cbr2d_forward.3} parent=11 // pred_fallthru
        _
    $region12: #{cbr2d_forward.3} parent=5 // pred_fallthru
      _
    %p140 = scmp.lt.s32.totalorder %s9, 4
    // Predicated region
    $region21: #{cbr2d_forward.3} parent=5 // pred_check
      %p141 = pneg %p140
    $region22: #{cbr2d_forward.3} parent=5 // pred_check_branch
      %143 = sbr.rel (%p141) target = $region24
    $region23: #{cbr2d_forward.3} parent=5 // pred_region
      // Predicated region
      $region25: #{cbr2d_forward.3} parent=23 // pred_check
        %p144 = pneg %p43
      $region26: #{cbr2d_forward.3} parent=23 // pred_check_branch
        %146 = sbr.rel (%p144) target = $region28
      $region27: #{cbr2d_forward.3} parent=23 // pred_region
        %s147 = smul.u32 8, %s17
        %p148 = scmp.lt.s32.totalorder %s16, 1
        %s149 = scalar_select %p148, %s16, 1
        %p150 = scmp.lt.s32.totalorder %s147, 15
        %s151 = scalar_select %p150, %s147, 15
        %s152 = smul.addr %s151, 2
        %s153 = smul.addr %s149, 32
        %s154 = sadd.s32 %s152, %s153
        %s155 = smul.addr %s154, 8
        %s156 = scalar_lea.vmem %s0, %s155
        %s157 = smul.u32 8, %s17
      $region28: #{cbr2d_forward.3} parent=23 // pred_fallthru
        _
    $region24: #{cbr2d_forward.3} parent=5 // pred_fallthru
      _
    %p158 = scmp.le.s32.totalorder 1, %s9
    %p159 = scmp.lt.s32.totalorder %s9, 5
    %p160 = pnand %p158, %p159
    %p161 = pneg %p160
    // Predicated region
    $region29: #{cbr2d_forward.3} parent=5 // pred_check
      _
    $region30: #{cbr2d_forward.3} parent=5 // pred_check_branch
      %163 = sbr.rel (%p160) target = $region32
    $region31: #{cbr2d_forward.3} parent=5 // pred_region
      %s164 = ssub.s32 %s9, 1
      %s165 = smul.u32 8, %s19
      %p166 = scmp.lt.s32.totalorder %s18, 1
      %s167 = scalar_select %p166, %s18, 1
      %p168 = scmp.lt.s32.totalorder %s165, 15
      %s169 = scalar_select %p168, %s165, 15
      %s170 = smul.addr %s169, 2
      %s171 = smul.addr %s167, 32
      %s172 = sadd.s32 %s170, %s171
      %s173 = smul.addr %s172, 8
      %s174 = scalar_lea.vmem %s0, %s173
      %p175 = pneg %p49
      %p176 = pneg %p46
      %p177 = pneg %p70
      %p178 = pneg %p67
      %p179 = pneg %p91
      %p180 = pneg %p88
      %p181 = pneg %p119
      %p182 = pneg %p116
      %s183 = smul.u32 8, %s19
      %p184 = scmp.lt.s32.totalorder %s18, 1
      %s185 = scalar_select %p184, %s18, 1
      %p186 = scmp.lt.s32.totalorder %s183, 15
      %s187 = scalar_select %p186, %s183, 15
      %s188 = smul.addr %s187, 2
      %s189 = smul.addr %s185, 32
      %s190 = sadd.s32 %s188, %s189
      %s191 = smul.addr %s190, 8
      %s192 = scalar_lea.vmem %s3, %s191
      %s193 = smul.u32 8, %s19
      %p194 = scmp.lt.s32.totalorder %s18, 1
      %s195 = scalar_select %p194, %s18, 1
      %p196 = scmp.lt.s32.totalorder %s193, 15
      %s197 = scalar_select %p196, %s193, 15
      %s198 = smul.addr %s197, 2
      %s199 = smul.addr %s195, 32
      %s200 = sadd.s32 %s198, %s199
      %s201 = smul.addr %s200, 8
      %s202 = scalar_lea.vmem %s0, %s201
      %s203 = smul.u32 8, %s19
      %s204 = smul.u32 8, %s19
      %p205 = scmp.lt.s32.totalorder %s18, 1
      %s206 = scalar_select %p205, %s18, 1
      %p207 = scmp.lt.s32.totalorder %s204, 15
      %s208 = scalar_select %p207, %s204, 15
      %s209 = smul.addr %s208, 2
      %s210 = smul.addr %s206, 32
      %s211 = sadd.s32 %s209, %s210
      %s212 = smul.addr %s211, 8
      %s213 = scalar_lea.vmem %s3, %s212
      %s214 = smul.u32 8, %s19
      %v215 = vld [vmem:[%s202] sm:$0xff]
      %v216 = vld [vmem:[%s202 + $0x8] sm:$0xff]
      %v217 = vld [vmem:[%s202 + $0x10] sm:$0xff]
      %v218 = vld [vmem:[%s202 + $0x18] sm:$0xff]
      %v219 = vld [vmem:[%s202 + $0x20] sm:$0xff]
      %v220 = vld [vmem:[%s202 + $0x28] sm:$0xff]
      %v221 = vld [vmem:[%s202 + $0x30] sm:$0xff]
      %v222 = vld [vmem:[%s202 + $0x38] sm:$0xff]
      %v223 = vld [vmem:[%s202 + $0x40] sm:$0xff]
      %v224 = vld [vmem:[%s202 + $0x48] sm:$0xff]
      %v225 = vld [vmem:[%s202 + $0x50] sm:$0xff]
      %v226 = vld [vmem:[%s202 + $0x58] sm:$0xff]
      %v227 = vld [vmem:[%s202 + $0x60] sm:$0xff]
      %v228 = vld [vmem:[%s202 + $0x68] sm:$0xff]
      %v229 = vld [vmem:[%s202 + $0x70] sm:$0xff]
      %v230 = vld [vmem:[%s202 + $0x78] sm:$0xff]
      %v231 = vld [vmem:[%s1] sm:$0x1]
      %v233 = vlaneseq
      %v234 = vshrl.u32 %v233, 7
      %v235 = vsub.s32 0, %v234
      %v236 = vrot.slane %v231, %v235
      %v238 = vmul.f32 %v215, %v236
      %v239 = vmul.f32 %v216, %v236
      %v240 = vmul.f32 %v217, %v236
      %v241 = vmul.f32 %v218, %v236
      %v242 = vmul.f32 %v219, %v236
      %v243 = vmul.f32 %v220, %v236
      %v244 = vmul.f32 %v221, %v236
      %v245 = vmul.f32 %v222, %v236
      %v246 = vmul.f32 %v223, %v236
      %v247 = vmul.f32 %v224, %v236
      %v248 = vmul.f32 %v225, %v236
      %v249 = vmul.f32 %v226, %v236
      %v250 = vmul.f32 %v227, %v236
      %v251 = vmul.f32 %v228, %v236
      %v252 = vmul.f32 %v229, %v236
      %v253 = vmul.f32 %v230, %v236
      %v254 = vld [vmem:[%s2] sm:$0x1]
      %v256 = vlaneseq
      %v257 = vshrl.u32 %v256, 7
      %v258 = vsub.s32 0, %v257
      %v259 = vrot.slane %v254, %v258
      %v261 = vadd.f32 %v238, %v259
      %v262 = vadd.f32 %v239, %v259
      %v263 = vadd.f32 %v240, %v259
      %v264 = vadd.f32 %v241, %v259
      %v265 = vadd.f32 %v242, %v259
      %v266 = vadd.f32 %v243, %v259
      %v267 = vadd.f32 %v244, %v259
      %v268 = vadd.f32 %v245, %v259
      %v269 = vadd.f32 %v246, %v259
      %v270 = vadd.f32 %v247, %v259
      %v271 = vadd.f32 %v248, %v259
      %v272 = vadd.f32 %v249, %v259
      %v273 = vadd.f32 %v250, %v259
      %v274 = vadd.f32 %v251, %v259
      %v275 = vadd.f32 %v252, %v259
      %v276 = vadd.f32 %v253, %v259
      %v277 = vmax.f32 %v261, 0.0
      %v278 = vmax.f32 %v262, 0.0
      %v279 = vmax.f32 %v263, 0.0
      %v280 = vmax.f32 %v264, 0.0
      %v281 = vmax.f32 %v265, 0.0
      %v282 = vmax.f32 %v266, 0.0
      %v283 = vmax.f32 %v267, 0.0
      %v284 = vmax.f32 %v268, 0.0
      %v285 = vmax.f32 %v269, 0.0
      %v286 = vmax.f32 %v270, 0.0
      %v287 = vmax.f32 %v271, 0.0
      %v288 = vmax.f32 %v272, 0.0
      %v289 = vmax.f32 %v273, 0.0
      %v290 = vmax.f32 %v274, 0.0
      %v291 = vmax.f32 %v275, 0.0
      %v292 = vmax.f32 %v276, 0.0
      %293 = vst [vmem:[%s213] sm:$0xff] %v277
      %294 = vst [vmem:[%s213 + $0x8] sm:$0xff] %v278
      %295 = vst [vmem:[%s213 + $0x10] sm:$0xff] %v279
      %296 = vst [vmem:[%s213 + $0x18] sm:$0xff] %v280
      %297 = vst [vmem:[%s213 + $0x20] sm:$0xff] %v281
      %298 = vst [vmem:[%s213 + $0x28] sm:$0xff] %v282
      %299 = vst [vmem:[%s213 + $0x30] sm:$0xff] %v283
      %300 = vst [vmem:[%s213 + $0x38] sm:$0xff] %v284
      %301 = vst [vmem:[%s213 + $0x40] sm:$0xff] %v285
      %302 = vst [vmem:[%s213 + $0x48] sm:$0xff] %v286
      %303 = vst [vmem:[%s213 + $0x50] sm:$0xff] %v287
      %304 = vst [vmem:[%s213 + $0x58] sm:$0xff] %v288
      %305 = vst [vmem:[%s213 + $0x60] sm:$0xff] %v289
      %306 = vst [vmem:[%s213 + $0x68] sm:$0xff] %v290
      %307 = vst [vmem:[%s213 + $0x70] sm:$0xff] %v291
      %308 = vst [vmem:[%s213 + $0x78] sm:$0xff] %v292
      %s309 = smul.u32 8, %s19
      %p310 = scmp.lt.s32.totalorder %s18, 1
      %s311 = scalar_select %p310, %s18, 1
      %p312 = scmp.lt.s32.totalorder %s309, 15
      %s313 = scalar_select %p312, %s309, 15
      %s314 = smul.addr %s313, 2
      %s315 = smul.addr %s311, 32
      %s316 = sadd.s32 %s314, %s315
      %s317 = smul.addr %s316, 8
      %s318 = scalar_lea.vmem %s3, %s317
      // Predicated region
      $region33: #{cbr2d_forward.3} parent=31 // pred_check
        %p319 = pneg %p116
      $region34: #{cbr2d_forward.3} parent=31 // pred_check_branch
        %321 = sbr.rel (%p319) target = $region36
      $region35: #{cbr2d_forward.3} parent=31 // pred_region
        %s322 = smul.u32 8, %s19
      $region36: #{cbr2d_forward.3} parent=31 // pred_fallthru
        _
    $region32: #{cbr2d_forward.3} parent=5 // pred_fallthru
      _
    %p323 = scmp.le.s32.totalorder 2, %s9
    // Predicated region
    $region37: #{cbr2d_forward.3} parent=5 // pred_check
      %p324 = pneg %p323
    $region38: #{cbr2d_forward.3} parent=5 // pred_check_branch
      %326 = sbr.rel (%p324) target = $region40
    $region39: #{cbr2d_forward.3} parent=5 // pred_region
      %s327 = ssub.s32 %s9, 2
      // Predicated region
      $region41: #{cbr2d_forward.3} parent=39 // pred_check
        %p328 = pneg %p122
      $region42: #{cbr2d_forward.3} parent=39 // pred_check_branch
        %330 = sbr.rel (%p328) target = $region44
      $region43: #{cbr2d_forward.3} parent=39 // pred_region
        %s331 = smul.u32 8, %s21
        %p332 = scmp.lt.s32.totalorder %s20, 1
        %s333 = scalar_select %p332, %s20, 1
        %p334 = scmp.lt.s32.totalorder %s331, 15
        %s335 = scalar_select %p334, %s331, 15
        %s336 = smul.addr %s335, 2
        %s337 = smul.addr %s333, 32
        %s338 = sadd.s32 %s336, %s337
        %s339 = smul.addr %s338, 8
        %s340 = scalar_lea.vmem %s3, %s339
      $region44: #{cbr2d_forward.3} parent=39 // pred_fallthru
        _
    $region40: #{cbr2d_forward.3} parent=5 // pred_fallthru
      _
  $region6: #{cbr2d_forward.3} parent=0 // loop_footer
    %s13 = sadd.s32 1, %s9
  $region7: #{cbr2d_forward.3} parent=0 // loop_footer_branch
    %8 = sbr.rel target = $region3
  $region8: #{cbr2d_forward.3} parent=0 // loop_exit
    _

// kernel: cbr2d_forward.2
$region0: #{cbr2d_forward.2}
  #allocation0 [shape = 'u32[]', space=smem, size = 0x4, offset = 0x4, fixed_abs, tag = 'smem constant byte address 0x4 - core index']
  #allocation1 [shape = 'u32[144,128]{1,0:T(1,128)}', space=vmem, size = 0x12000, scoped, tag = 'internal scratch']
  %s0 = inlined_call_operand.vmem [shape: bf16[2,2,10,18,8], index: 0, kind: input, shape index: {}]
  %s1 = inlined_call_operand.vmem [shape: bf16[72,128], index: 1, kind: input, shape index: {}]
  %s2 = inlined_call_operand.vmem [shape: f32[1,128], index: 2, kind: input, shape index: {}]
  %s3 = inlined_call_operand.vmem [shape: f32[2,16,16,128], index: 3, kind: output, shape index: {0}]
  %s4 = inlined_call_operand.vmem [shape: f32[2,2,2,128], index: 4, kind: output, shape index: {1}]
  %5 = xla_tuple %s3, %s4
  %s6 = sld [smem:[#allocation0]]
  $region53: #{cbr2d_forward.2} parent=0
    _
  %s8 = ssub.s32 1, %s6
  %s9 = scalar_select 0, %s8, %s6
  loop: start=0, step=1, limit=6
  $region2: #{cbr2d_forward.2} parent=0 // loop_pre_header
    _
  $region3: #{cbr2d_forward.2} parent=0 // loop_header
    %s11 = sphi 0, %s15
    %p12 = scmp.ge.s32.totalorder %s11, 6
    %s18 = sphi 0, %s30
    %s19 = sphi 0, %s26
    %s20 = sphi 0, %s18
    %s21 = sphi 0, %s19
    %s22 = sphi 0, %s20
    %s23 = sphi 0, %s21
    %s35 = sphi 0, %s37
    %s38 = sphi 0, %s35
    %s39 = sphi 0, %s38
    %s55 = sphi 0, %s39
    %s59 = sphi 0, %s59
    %s61 = sphi 0, %s59
    %s62 = sphi 0, %s61
    %s76 = sphi 0, %s62
    %s80 = sphi 0, %s80
    %s82 = sphi 0, %s80
    %s83 = sphi 0, %s82
    %s97 = sphi 0, %s83
    %s105 = sphi 0, %s107
    %s108 = sphi 0, %s105
    %s109 = sphi 0, %s108
    %s125 = sphi 0, %s109
    %s133 = sphi 0, %s135
    %s136 = sphi 0, %s133
    %s137 = sphi 0, %s136
    %s153 = sphi 0, %s137
  $region4: #{cbr2d_forward.2} parent=0 // loop_header_branch
    %14 = sbr.rel (%p12) target = $region8
  $region5: #{cbr2d_forward.2} parent=0 // loop_body
    %s16 = ssub.s32 %s11, 1
    %s17 = ssub.s32 %s11, 2
    %s24 = sadd.s32 1, %s19
    %p25 = scmp.ge.s32.totalorder %s24, 2
    %s26 = scalar_select %p25, 0, %s24
    %s27 = sadd.s32 1, %s18
    %s28 = scalar_select %p25, %s27, %s18
    %p29 = scmp.ge.s32.totalorder %s28, 2
    %s30 = scalar_select %p29, 0, %s28
    %s31 = ssub.s32 %s18, %s30
    %s32 = ssub.s32 %s19, %s26
    %s33 = sor.u32 %s31, %s32
    %p34 = scmp.eq.s32.totalorder %s33, 0
    %s36 = sadd.s32 %s35, 1
    %s37 = scalar_select %p34, %s35, %s36
    %p40 = pneg %p34
    %p41 = scmp.eq.s32.totalorder %s11, 3
    %p42 = por %p40, %p41
    %p43 = scmp.ne.s32.totalorder %s35, %s38
    %p44 = scmp.eq.s32.totalorder %s11, 0
    %p45 = por %p43, %p44
    %p46 = scmp.ne.s32.totalorder %s35, %s38
    %p47 = scmp.eq.s32.totalorder %s16, 3
    %p48 = por %p46, %p47
    %p49 = scmp.ne.s32.totalorder %s38, %s39
    %p50 = scmp.eq.s32.totalorder %s16, 0
    %p51 = por %p49, %p50
    %p52 = scmp.ne.s32.totalorder %s38, %s39
    %p53 = scmp.eq.s32.totalorder %s17, 3
    %p54 = por %p52, %p53
    %p56 = scmp.ne.s32.totalorder %s39, %s55
    %p57 = scmp.eq.s32.totalorder %s17, 0
    %p58 = por %p56, %p57
    %s60 = sadd.s32 %s59, 1
    %p63 = scmp.eq.s32.totalorder %s11, 3
    %p64 = scmp.ne.s32.totalorder %s59, %s61
    %p65 = scmp.eq.s32.totalorder %s11, 0
    %p66 = por %p64, %p65
    %p67 = scmp.ne.s32.totalorder %s59, %s61
    %p68 = scmp.eq.s32.totalorder %s16, 3
    %p69 = por %p67, %p68
    %p70 = scmp.ne.s32.totalorder %s61, %s62
    %p71 = scmp.eq.s32.totalorder %s16, 0
    %p72 = por %p70, %p71
    %p73 = scmp.ne.s32.totalorder %s61, %s62
    %p74 = scmp.eq.s32.totalorder %s17, 3
    %p75 = por %p73, %p74
    %p77 = scmp.ne.s32.totalorder %s62, %s76
    %p78 = scmp.eq.s32.totalorder %s17, 0
    %p79 = por %p77, %p78
    %s81 = sadd.s32 %s80, 1
    %p84 = scmp.eq.s32.totalorder %s11, 3
    %p85 = scmp.ne.s32.totalorder %s80, %s82
    %p86 = scmp.eq.s32.totalorder %s11, 0
    %p87 = por %p85, %p86
    %p88 = scmp.ne.s32.totalorder %s80, %s82
    %p89 = scmp.eq.s32.totalorder %s16, 3
    %p90 = por %p88, %p89
    %p91 = scmp.ne.s32.totalorder %s82, %s83
    %p92 = scmp.eq.s32.totalorder %s16, 0
    %p93 = por %p91, %p92
    %p94 = scmp.ne.s32.totalorder %s82, %s83
    %p95 = scmp.eq.s32.totalorder %s17, 3
    %p96 = por %p94, %p95
    %p98 = scmp.ne.s32.totalorder %s83, %s97
    %p99 = scmp.eq.s32.totalorder %s17, 0
    %p100 = por %p98, %p99
    %s101 = ssub.s32 %s18, %s30
    %s102 = ssub.s32 %s19, %s26
    %s103 = sor.u32 %s101, %s102
    %p104 = scmp.eq.s32.totalorder %s103, 0
    %s106 = sadd.s32 %s105, 1
    %s107 = scalar_select %p104, %s105, %s106
    %p110 = pneg %p104
    %p111 = scmp.eq.s32.totalorder %s11, 3
    %p112 = por %p110, %p111
    %p113 = scmp.ne.s32.totalorder %s105, %s108
    %p114 = scmp.eq.s32.totalorder %s11, 0
    %p115 = por %p113, %p114
    %p116 = scmp.ne.s32.totalorder %s105, %s108
    %p117 = scmp.eq.s32.totalorder %s16, 3
    %p118 = por %p116, %p117
    %p119 = scmp.ne.s32.totalorder %s108, %s109
    %p120 = scmp.eq.s32.totalorder %s16, 0
    %p121 = por %p119, %p120
    %p122 = scmp.ne.s32.totalorder %s108, %s109
    %p123 = scmp.eq.s32.totalorder %s17, 3
    %p124 = por %p122, %p123
    %p126 = scmp.ne.s32.totalorder %s109, %s125
    %p127 = scmp.eq.s32.totalorder %s17, 0
    %p128 = por %p126, %p127
    %s129 = ssub.s32 %s18, %s30
    %s130 = ssub.s32 %s19, %s26
    %s131 = sor.u32 %s129, %s130
    %p132 = scmp.eq.s32.totalorder %s131, 0
    %s134 = sadd.s32 %s133, 1
    %s135 = scalar_select %p132, %s133, %s134
    %p138 = pneg %p132
    %p139 = scmp.eq.s32.totalorder %s11, 3
    %p140 = por %p138, %p139
    %p141 = scmp.ne.s32.totalorder %s133, %s136
    %p142 = scmp.eq.s32.totalorder %s11, 0
    %p143 = por %p141, %p142
    %p144 = scmp.ne.s32.totalorder %s133, %s136
    %p145 = scmp.eq.s32.totalorder %s16, 3
    %p146 = por %p144, %p145
    %p147 = scmp.ne.s32.totalorder %s136, %s137
    %p148 = scmp.eq.s32.totalorder %s16, 0
    %p149 = por %p147, %p148
    %p150 = scmp.ne.s32.totalorder %s136, %s137
    %p151 = scmp.eq.s32.totalorder %s17, 3
    %p152 = por %p150, %p151
    %p154 = scmp.ne.s32.totalorder %s137, %s153
    %p155 = scmp.eq.s32.totalorder %s17, 0
    %p156 = por %p154, %p155
    %p157 = scmp.le.s32.totalorder 1, %s11
    %p158 = scmp.lt.s32.totalorder %s11, 5
    %p159 = pnand %p157, %p158
    %p160 = pneg %p159
    // Predicated region
    $region9: #{cbr2d_forward.2} parent=5 // pred_check
      _
    $region10: #{cbr2d_forward.2} parent=5 // pred_check_branch
      %162 = sbr.rel (%p159) target = $region12
    $region11: #{cbr2d_forward.2} parent=5 // pred_region
      %s163 = ssub.s32 %s11, 1
      // Predicated region
      $region13: #{cbr2d_forward.2} parent=11 // pred_check
        %p164 = pneg %p72
      $region14: #{cbr2d_forward.2} parent=11 // pred_check_branch
        %166 = sbr.rel (%p164) target = $region16
      $region15: #{cbr2d_forward.2} parent=11 // pred_region
        _
      $region16: #{cbr2d_forward.2} parent=11 // pred_fallthru
        _
      // Predicated region
      $region17: #{cbr2d_forward.2} parent=11 // pred_check
        %p167 = pneg %p93
      $region18: #{cbr2d_forward.2} parent=11 // pred_check_branch
        %169 = sbr.rel (%p167) target = $region20
      $region19: #{cbr2d_forward.2} parent=11 // pred_region
        _
      $region20: #{cbr2d_forward.2} parent=11 // pred_fallthru
        _
    $region12: #{cbr2d_forward.2} parent=5 // pred_fallthru
      _
    %p170 = scmp.lt.s32.totalorder %s11, 4
    // Predicated region
    $region21: #{cbr2d_forward.2} parent=5 // pred_check
      %p171 = pneg %p170
    $region22: #{cbr2d_forward.2} parent=5 // pred_check_branch
      %173 = sbr.rel (%p171) target = $region24
    $region23: #{cbr2d_forward.2} parent=5 // pred_region
      // Predicated region
      $region25: #{cbr2d_forward.2} parent=23 // pred_check
        %p174 = pneg %p45
      $region26: #{cbr2d_forward.2} parent=23 // pred_check_branch
        %176 = sbr.rel (%p174) target = $region28
      $region27: #{cbr2d_forward.2} parent=23 // pred_region
        %p177 = scmp.lt.s32.totalorder %s18, 1
        %s178 = scalar_select %p177, %s18, 1
        %p179 = scmp.lt.s32.totalorder %s19, 1
        %s180 = scalar_select %p179, %s19, 1
        %s181 = smul.addr %s180, 30
        %s182 = smul.addr %s178, 60
        %s183 = sadd.s32 %s181, %s182
        %s184 = smul.addr %s183, 4
        %s185 = scalar_lea.vmem %s0, %s184
      $region28: #{cbr2d_forward.2} parent=23 // pred_fallthru
        _
    $region24: #{cbr2d_forward.2} parent=5 // pred_fallthru
      _
    %p186 = scmp.le.s32.totalorder 1, %s11
    %p187 = scmp.lt.s32.totalorder %s11, 5
    %p188 = pnand %p186, %p187
    %p189 = pneg %p188
    // Predicated region
    $region29: #{cbr2d_forward.2} parent=5 // pred_check
      _
    $region30: #{cbr2d_forward.2} parent=5 // pred_check_branch
      %191 = sbr.rel (%p188) target = $region32
    $region31: #{cbr2d_forward.2} parent=5 // pred_region
      %s192 = ssub.s32 %s11, 1
      %p193 = scmp.lt.s32.totalorder %s20, 1
      %s194 = scalar_select %p193, %s20, 1
      %p195 = scmp.lt.s32.totalorder %s21, 1
      %s196 = scalar_select %p195, %s21, 1
      %s197 = smul.addr %s196, 30
      %s198 = smul.addr %s194, 60
      %s199 = sadd.s32 %s197, %s198
      %s200 = smul.addr %s199, 4
      %s201 = scalar_lea.vmem %s0, %s200
      %p202 = pneg %p51
      %p203 = pneg %p48
      %p204 = pneg %p72
      %p205 = pneg %p69
      %p206 = pneg %p93
      %p207 = pneg %p90
      %p208 = pneg %p121
      %p209 = pneg %p118
      %s210 = smul.u32 8, %s21
      %p211 = scmp.lt.s32.totalorder %s20, 1
      %s212 = scalar_select %p211, %s20, 1
      %p213 = scmp.lt.s32.totalorder %s210, 15
      %s214 = scalar_select %p213, %s210, 15
      %s215 = smul.addr %s214, 2
      %s216 = smul.addr %s212, 32
      %s217 = sadd.s32 %s215, %s216
      %s218 = smul.addr %s217, 8
      %s219 = scalar_lea.vmem %s3, %s218
      %p220 = pneg %p149
      %p221 = pneg %p146
      %p222 = scmp.lt.s32.totalorder %s20, 1
      %s223 = scalar_select %p222, %s20, 1
      %p224 = scmp.lt.s32.totalorder %s21, 1
      %s225 = scalar_select %p224, %s21, 1
      %s226 = smul.addr %s223, 2
      %s227 = sadd.s32 %s225, %s226
      %s228 = smul.addr %s227, 2
      %s229 = scalar_lea.vmem %s4, %s228
      %p230 = scmp.lt.s32.totalorder %s20, 1
      %s231 = scalar_select %p230, %s20, 1
      %p232 = scmp.lt.s32.totalorder %s21, 1
      %s233 = scalar_select %p232, %s21, 1
      %s234 = smul.addr %s233, 30
      %s235 = smul.addr %s231, 60
      %s236 = sadd.s32 %s234, %s235
      %s237 = smul.addr %s236, 4
      %s238 = scalar_lea.vmem %s0, %s237
      %s239 = smul.u32 8, %s21
      %p240 = scmp.lt.s32.totalorder %s20, 1
      %s241 = scalar_select %p240, %s20, 1
      %p242 = scmp.lt.s32.totalorder %s239, 15
      %s243 = scalar_select %p242, %s239, 15
      %s244 = smul.addr %s243, 2
      %s245 = smul.addr %s241, 32
      %s246 = sadd.s32 %s244, %s245
      %s247 = smul.addr %s246, 8
      %s248 = scalar_lea.vmem %s3, %s247
      %s249 = smul.u32 8, %s21
      %p250 = scmp.lt.s32.totalorder %s20, 1
      %s251 = scalar_select %p250, %s20, 1
      %p252 = scmp.lt.s32.totalorder %s21, 1
      %s253 = scalar_select %p252, %s21, 1
      %s254 = smul.addr %s251, 2
      %s255 = sadd.s32 %s253, %s254
      %s256 = smul.addr %s255, 2
      %s257 = scalar_lea.vmem %s4, %s256
      %v259 = vld [vmem:[%s238] sm:$0xf]
      %v260 = vld [vmem:[%s238 + $0x4] sm:$0xf]
      %v261 = vld [vmem:[%s238 + $0xc] sm:$0xf]
      %v262 = vld [vmem:[%s238 + $0x10] sm:$0xf]
      %v263 = vld [vmem:[%s238 + $0x18] sm:$0xf]
      %v264 = vld [vmem:[%s238 + $0x1c] sm:$0xf]
      %v265 = vld [vmem:[%s238 + $0x24] sm:$0xf]
      %v266 = vld [vmem:[%s238 + $0x28] sm:$0xf]
      %v267 = vld [vmem:[%s238 + $0x30] sm:$0xf]
      %v268 = vld [vmem:[%s238 + $0x34] sm:$0xf]
      %v269 = vld [vmem:[%s238 + $0x3c] sm:$0xf]
      %v270 = vld [vmem:[%s238 + $0x40] sm:$0xf]
      %v271 = vld [vmem:[%s238 + $0x48] sm:$0xf]
      %v272 = vld [vmem:[%s238 + $0x4c] sm:$0xf]
      %v273 = vld [vmem:[%s238 + $0x54] sm:$0xf]
      %v274 = vld [vmem:[%s238 + $0x58] sm:$0xf]
      %v275 = vld [vmem:[%s238 + $0x8] sm:$0x1]
      %v276 = vld [vmem:[%s238 + $0x14] sm:$0x1]
      %v277 = vld [vmem:[%s238 + $0x20] sm:$0x1]
      %v278 = vld [vmem:[%s238 + $0x2c] sm:$0x1]
      %v279 = vld [vmem:[%s238 + $0x38] sm:$0x1]
      %v280 = vld [vmem:[%s238 + $0x44] sm:$0x1]
      %v281 = vld [vmem:[%s238 + $0x50] sm:$0x1]
      %v282 = vld [vmem:[%s238 + $0x5c] sm:$0x1]
      %v283 = vld [vmem:[%s238] sm:$0xe]
      %v284 = vld [vmem:[%s238 + $0xc] sm:$0xe]
      %v285 = vld [vmem:[%s238 + $0x18] sm:$0xe]
      %v286 = vld [vmem:[%s238 + $0x24] sm:$0xe]
      %v287 = vld [vmem:[%s238 + $0x30] sm:$0xe]
      %v288 = vld [vmem:[%s238 + $0x3c] sm:$0xe]
      %v289 = vld [vmem:[%s238 + $0x48] sm:$0xe]
      %v290 = vld [vmem:[%s238 + $0x54] sm:$0xe]
      %s291 = scalar_lea.vmem %s238, 12
      %v292 = vld [vmem:[%s291] sm:$0xf]
      %v293 = vld [vmem:[%s291 + $0x4] sm:$0xf]
      %v294 = vld [vmem:[%s291 + $0xc] sm:$0xf]
      %v295 = vld [vmem:[%s291 + $0x10] sm:$0xf]
      %v296 = vld [vmem:[%s291 + $0x18] sm:$0xf]
      %v297 = vld [vmem:[%s291 + $0x1c] sm:$0xf]
      %v298 = vld [vmem:[%s291 + $0x24] sm:$0xf]
      %v299 = vld [vmem:[%s291 + $0x28] sm:$0xf]
      %v300 = vld [vmem:[%s291 + $0x30] sm:$0xf]
      %v301 = vld [vmem:[%s291 + $0x34] sm:$0xf]
      %v302 = vld [vmem:[%s291 + $0x3c] sm:$0xf]
      %v303 = vld [vmem:[%s291 + $0x40] sm:$0xf]
      %v304 = vld [vmem:[%s291 + $0x48] sm:$0xf]
      %v305 = vld [vmem:[%s291 + $0x4c] sm:$0xf]
      %v306 = vld [vmem:[%s291 + $0x54] sm:$0xf]
      %v307 = vld [vmem:[%s291 + $0x58] sm:$0xf]
      %v308 = vld [vmem:[%s291 + $0x8] sm:$0x1]
      %v309 = vld [vmem:[%s291 + $0x14] sm:$0x1]
      %v310 = vld [vmem:[%s291 + $0x20] sm:$0x1]
      %v311 = vld [vmem:[%s291 + $0x2c] sm:$0x1]
      %v312 = vld [vmem:[%s291 + $0x38] sm:$0x1]
      %v313 = vld [vmem:[%s291 + $0x44] sm:$0x1]
      %v314 = vld [vmem:[%s291 + $0x50] sm:$0x1]
      %v315 = vld [vmem:[%s291 + $0x5c] sm:$0x1]
      %v316 = vld [vmem:[%s291] sm:$0xe]
      %v317 = vld [vmem:[%s291 + $0xc] sm:$0xe]
      %v318 = vld [vmem:[%s291 + $0x18] sm:$0xe]
      %v319 = vld [vmem:[%s291 + $0x24] sm:$0xe]
      %v320 = vld [vmem:[%s291 + $0x30] sm:$0xe]
      %v321 = vld [vmem:[%s291 + $0x3c] sm:$0xe]
      %v322 = vld [vmem:[%s291 + $0x48] sm:$0xe]
      %v323 = vld [vmem:[%s291 + $0x54] sm:$0xe]
      %s324 = scalar_lea.vmem %s238, 24
      %v325 = vld [vmem:[%s324] sm:$0xf]
      %v326 = vld [vmem:[%s324 + $0x4] sm:$0xf]
      %v327 = vld [vmem:[%s324 + $0xc] sm:$0xf]
      %v328 = vld [vmem:[%s324 + $0x10] sm:$0xf]
      %v329 = vld [vmem:[%s324 + $0x18] sm:$0xf]
      %v330 = vld [vmem:[%s324 + $0x1c] sm:$0xf]
      %v331 = vld [vmem:[%s324 + $0x24] sm:$0xf]
      %v332 = vld [vmem:[%s324 + $0x28] sm:$0xf]
      %v333 = vld [vmem:[%s324 + $0x30] sm:$0xf]
      %v334 = vld [vmem:[%s324 + $0x34] sm:$0xf]
      %v335 = vld [vmem:[%s324 + $0x3c] sm:$0xf]
      %v336 = vld [vmem:[%s324 + $0x40] sm:$0xf]
      %v337 = vld [vmem:[%s324 + $0x48] sm:$0xf]
      %v338 = vld [vmem:[%s324 + $0x4c] sm:$0xf]
      %v339 = vld [vmem:[%s324 + $0x54] sm:$0xf]
      %v340 = vld [vmem:[%s324 + $0x58] sm:$0xf]
      %v341 = vld [vmem:[%s324 + $0x8] sm:$0x1]
      %v342 = vld [vmem:[%s324 + $0x14] sm:$0x1]
      %v343 = vld [vmem:[%s324 + $0x20] sm:$0x1]
      %v344 = vld [vmem:[%s324 + $0x2c] sm:$0x1]
      %v345 = vld [vmem:[%s324 + $0x38] sm:$0x1]
      %v346 = vld [vmem:[%s324 + $0x44] sm:$0x1]
      %v347 = vld [vmem:[%s324 + $0x50] sm:$0x1]
      %v348 = vld [vmem:[%s324 + $0x5c] sm:$0x1]
      %v349 = vld [vmem:[%s324] sm:$0xe]
      %v350 = vld [vmem:[%s324 + $0xc] sm:$0xe]
      %v351 = vld [vmem:[%s324 + $0x18] sm:$0xe]
      %v352 = vld [vmem:[%s324 + $0x24] sm:$0xe]
      %v353 = vld [vmem:[%s324 + $0x30] sm:$0xe]
      %v354 = vld [vmem:[%s324 + $0x3c] sm:$0xe]
      %v355 = vld [vmem:[%s324 + $0x48] sm:$0xe]
      %v356 = vld [vmem:[%s324 + $0x54] sm:$0xe]
      %v373 = vunpack.c.l.b16 %v259
      %v374 = vunpack.c.l.b16 %v260
      %v375 = vunpack.c.l.b16 %v261
      %v376 = vunpack.c.l.b16 %v262
      %v377 = vunpack.c.l.b16 %v263
      %v378 = vunpack.c.l.b16 %v264
      %v379 = vunpack.c.l.b16 %v265
      %v380 = vunpack.c.l.b16 %v266
      %v381 = vunpack.c.l.b16 %v267
      %v382 = vunpack.c.l.b16 %v268
      %v383 = vunpack.c.l.b16 %v269
      %v384 = vunpack.c.l.b16 %v270
      %v385 = vunpack.c.l.b16 %v271
      %v386 = vunpack.c.l.b16 %v272
      %v387 = vunpack.c.l.b16 %v273
      %v388 = vunpack.c.l.b16 %v274
      %v389 = vpack.c.b16 %v374, %v373
      %v390 = vpack.c.b16 %v376, %v375
      %v391 = vpack.c.b16 %v378, %v377
      %v392 = vpack.c.b16 %v380, %v379
      %v393 = vpack.c.b16 %v382, %v381
      %v394 = vpack.c.b16 %v384, %v383
      %v395 = vpack.c.b16 %v386, %v385
      %v396 = vpack.c.b16 %v388, %v387
      %v405 = vunpack.c.l.b16 %v275
      %v406 = vunpack.c.l.b16 %v276
      %v407 = vunpack.c.l.b16 %v277
      %v408 = vunpack.c.l.b16 %v278
      %v409 = vunpack.c.l.b16 %v279
      %v410 = vunpack.c.l.b16 %v280
      %v411 = vunpack.c.l.b16 %v281
      %v412 = vunpack.c.l.b16 %v282
      %v413 = vpack.c.b16 %v405, %v405
      %v414 = vpack.c.b16 %v406, %v406
      %v415 = vpack.c.b16 %v407, %v407
      %v416 = vpack.c.b16 %v408, %v408
      %v417 = vpack.c.b16 %v409, %v409
      %v418 = vpack.c.b16 %v410, %v410
      %v419 = vpack.c.b16 %v411, %v411
      %v420 = vpack.c.b16 %v412, %v412
      %vm421 = vsmask.f32 7424
      %v423 = vshrl.u32 %v389, 16
      %v425 = vshll.u32 %v389, 16
      %v427 = vrot.slane %v425, 1
      %v428 = vor.u32 %v423, %v427
      %v430 = vshll.u32 %v413, 16
      %v432 = vrot.slane %v430, 1
      %v433 = vsel %vm421, %v428, %v432
      %v435 = vshrl.u32 %v390, 16
      %v437 = vshll.u32 %v390, 16
      %v439 = vrot.slane %v437, 1
      %v440 = vor.u32 %v435, %v439
      %v442 = vshll.u32 %v414, 16
      %v444 = vrot.slane %v442, 1
      %v445 = vsel %vm421, %v440, %v444
      %v447 = vshrl.u32 %v391, 16
      %v449 = vshll.u32 %v391, 16
      %v451 = vrot.slane %v449, 1
      %v452 = vor.u32 %v447, %v451
      %v454 = vshll.u32 %v415, 16
      %v456 = vrot.slane %v454, 1
      %v457 = vsel %vm421, %v452, %v456
      %v459 = vshrl.u32 %v392, 16
      %v461 = vshll.u32 %v392, 16
      %v463 = vrot.slane %v461, 1
      %v464 = vor.u32 %v459, %v463
      %v466 = vshll.u32 %v416, 16
      %v468 = vrot.slane %v466, 1
      %v469 = vsel %vm421, %v464, %v468
      %v471 = vshrl.u32 %v393, 16
      %v473 = vshll.u32 %v393, 16
      %v475 = vrot.slane %v473, 1
      %v476 = vor.u32 %v471, %v475
      %v478 = vshll.u32 %v417, 16
      %v480 = vrot.slane %v478, 1
      %v481 = vsel %vm421, %v476, %v480
      %v483 = vshrl.u32 %v394, 16
      %v485 = vshll.u32 %v394, 16
      %v487 = vrot.slane %v485, 1
      %v488 = vor.u32 %v483, %v487
      %v490 = vshll.u32 %v418, 16
      %v492 = vrot.slane %v490, 1
      %v493 = vsel %vm421, %v488, %v492
      %v495 = vshrl.u32 %v395, 16
      %v497 = vshll.u32 %v395, 16
      %v499 = vrot.slane %v497, 1
      %v500 = vor.u32 %v495, %v499
      %v502 = vshll.u32 %v419, 16
      %v504 = vrot.slane %v502, 1
      %v505 = vsel %vm421, %v500, %v504
      %v507 = vshrl.u32 %v396, 16
      %v509 = vshll.u32 %v396, 16
      %v511 = vrot.slane %v509, 1
      %v512 = vor.u32 %v507, %v511
      %v514 = vshll.u32 %v420, 16
      %v516 = vrot.slane %v514, 1
      %v517 = vsel %vm421, %v512, %v516
      %518 = vrot.lane.b32.xlu0 %v433, 8
      %v519 = vpop.permute.xlu0 %518
      %520 = vrot.lane.b32.xlu0 %v445, 8
      %v521 = vpop.permute.xlu0 %520
      %522 = vrot.lane.b32.xlu0 %v457, 8
      %v523 = vpop.permute.xlu0 %522
      %524 = vrot.lane.b32.xlu0 %v469, 8
      %v525 = vpop.permute.xlu0 %524
      %526 = vrot.lane.b32.xlu0 %v481, 8
      %v527 = vpop.permute.xlu0 %526
      %528 = vrot.lane.b32.xlu0 %v493, 8
      %v529 = vpop.permute.xlu0 %528
      %530 = vrot.lane.b32.xlu0 %v505, 8
      %v531 = vpop.permute.xlu0 %530
      %532 = vrot.lane.b32.xlu0 %v517, 8
      %v533 = vpop.permute.xlu0 %532
      %v542 = vunpack.c.l.b16 %v283
      %v543 = vunpack.c.l.b16 %v284
      %v544 = vunpack.c.l.b16 %v285
      %v545 = vunpack.c.l.b16 %v286
      %v546 = vunpack.c.l.b16 %v287
      %v547 = vunpack.c.l.b16 %v288
      %v548 = vunpack.c.l.b16 %v289
      %v549 = vunpack.c.l.b16 %v290
      %v550 = vpack.c.b16 %v374, %v542
      %v551 = vpack.c.b16 %v376, %v543
      %v552 = vpack.c.b16 %v378, %v544
      %v553 = vpack.c.b16 %v380, %v545
      %v554 = vpack.c.b16 %v382, %v546
      %v555 = vpack.c.b16 %v384, %v547
      %v556 = vpack.c.b16 %v386, %v548
      %v557 = vpack.c.b16 %v388, %v549
      %vm558 = vcmask 1046528
      %v559 = vrot.slane %v550, 1
      %v560 = vrot.slane %v413, 1
      %v561 = vsel %vm558, %v559, %v560
      %v562 = vrot.slane %v551, 1
      %v563 = vrot.slane %v414, 1
      %v564 = vsel %vm558, %v562, %v563
      %v565 = vrot.slane %v552, 1
      %v566 = vrot.slane %v415, 1
      %v567 = vsel %vm558, %v565, %v566
      %v568 = vrot.slane %v553, 1
      %v569 = vrot.slane %v416, 1
      %v570 = vsel %vm558, %v568, %v569
      %v571 = vrot.slane %v554, 1
      %v572 = vrot.slane %v417, 1
      %v573 = vsel %vm558, %v571, %v572
      %v574 = vrot.slane %v555, 1
      %v575 = vrot.slane %v418, 1
      %v576 = vsel %vm558, %v574, %v575
      %v577 = vrot.slane %v556, 1
      %v578 = vrot.slane %v419, 1
      %v579 = vsel %vm558, %v577, %v578
      %v580 = vrot.slane %v557, 1
      %v581 = vrot.slane %v420, 1
      %v582 = vsel %vm558, %v580, %v581
      %583 = vrot.lane.b32.xlu0 %v561, 16
      %v584 = vpop.permute.xlu0 %583
      %585 = vrot.lane.b32.xlu0 %v564, 16
      %v586 = vpop.permute.xlu0 %585
      %587 = vrot.lane.b32.xlu0 %v567, 16
      %v588 = vpop.permute.xlu0 %587
      %589 = vrot.lane.b32.xlu0 %v570, 16
      %v590 = vpop.permute.xlu0 %589
      %591 = vrot.lane.b32.xlu0 %v573, 16
      %v592 = vpop.permute.xlu0 %591
      %593 = vrot.lane.b32.xlu0 %v576, 16
      %v594 = vpop.permute.xlu0 %593
      %595 = vrot.lane.b32.xlu0 %v579, 16
      %v596 = vpop.permute.xlu0 %595
      %597 = vrot.lane.b32.xlu0 %v582, 16
      %v598 = vpop.permute.xlu0 %597
      %v615 = vunpack.c.l.b16 %v292
      %v616 = vunpack.c.l.b16 %v293
      %v617 = vunpack.c.l.b16 %v294
      %v618 = vunpack.c.l.b16 %v295
      %v619 = vunpack.c.l.b16 %v296
      %v620 = vunpack.c.l.b16 %v297
      %v621 = vunpack.c.l.b16 %v298
      %v622 = vunpack.c.l.b16 %v299
      %v623 = vunpack.c.l.b16 %v300
      %v624 = vunpack.c.l.b16 %v301
      %v625 = vunpack.c.l.b16 %v302
      %v626 = vunpack.c.l.b16 %v303
      %v627 = vunpack.c.l.b16 %v304
      %v628 = vunpack.c.l.b16 %v305
      %v629 = vunpack.c.l.b16 %v306
      %v630 = vunpack.c.l.b16 %v307
      %v631 = vpack.c.b16 %v616, %v615
      %v632 = vpack.c.b16 %v618, %v617
      %v633 = vpack.c.b16 %v620, %v619
      %v634 = vpack.c.b16 %v622, %v621
      %v635 = vpack.c.b16 %v624, %v623
      %v636 = vpack.c.b16 %v626, %v625
      %v637 = vpack.c.b16 %v628, %v627
      %v638 = vpack.c.b16 %v630, %v629
      %639 = vrot.lane.b32.xlu0 %v631, 24
      %v640 = vpop.permute.xlu0 %639
      %641 = vrot.lane.b32.xlu0 %v632, 24
      %v642 = vpop.permute.xlu0 %641
      %643 = vrot.lane.b32.xlu0 %v633, 24
      %v644 = vpop.permute.xlu0 %643
      %645 = vrot.lane.b32.xlu0 %v634, 24
      %v646 = vpop.permute.xlu0 %645
      %647 = vrot.lane.b32.xlu0 %v635, 24
      %v648 = vpop.permute.xlu0 %647
      %649 = vrot.lane.b32.xlu0 %v636, 24
      %v650 = vpop.permute.xlu0 %649
      %651 = vrot.lane.b32.xlu0 %v637, 24
      %v652 = vpop.permute.xlu0 %651
      %653 = vrot.lane.b32.xlu0 %v638, 24
      %v654 = vpop.permute.xlu0 %653
      %v663 = vunpack.c.l.b16 %v308
      %v664 = vunpack.c.l.b16 %v309
      %v665 = vunpack.c.l.b16 %v310
      %v666 = vunpack.c.l.b16 %v311
      %v667 = vunpack.c.l.b16 %v312
      %v668 = vunpack.c.l.b16 %v313
      %v669 = vunpack.c.l.b16 %v314
      %v670 = vunpack.c.l.b16 %v315
      %v671 = vpack.c.b16 %v663, %v663
      %v672 = vpack.c.b16 %v664, %v664
      %v673 = vpack.c.b16 %v665, %v665
      %v674 = vpack.c.b16 %v666, %v666
      %v675 = vpack.c.b16 %v667, %v667
      %v676 = vpack.c.b16 %v668, %v668
      %v677 = vpack.c.b16 %v669, %v669
      %v678 = vpack.c.b16 %v670, %v670
      %v680 = vshrl.u32 %v631, 16
      %v682 = vshll.u32 %v631, 16
      %v684 = vrot.slane %v682, 1
      %v685 = vor.u32 %v680, %v684
      %v687 = vshll.u32 %v671, 16
      %v689 = vrot.slane %v687, 1
      %v690 = vsel %vm421, %v685, %v689
      %v692 = vshrl.u32 %v632, 16
      %v694 = vshll.u32 %v632, 16
      %v696 = vrot.slane %v694, 1
      %v697 = vor.u32 %v692, %v696
      %v699 = vshll.u32 %v672, 16
      %v701 = vrot.slane %v699, 1
      %v702 = vsel %vm421, %v697, %v701
      %v704 = vshrl.u32 %v633, 16
      %v706 = vshll.u32 %v633, 16
      %v708 = vrot.slane %v706, 1
      %v709 = vor.u32 %v704, %v708
      %v711 = vshll.u32 %v673, 16
      %v713 = vrot.slane %v711, 1
      %v714 = vsel %vm421, %v709, %v713
      %v716 = vshrl.u32 %v634, 16
      %v718 = vshll.u32 %v634, 16
      %v720 = vrot.slane %v718, 1
      %v721 = vor.u32 %v716, %v720
      %v723 = vshll.u32 %v674, 16
      %v725 = vrot.slane %v723, 1
      %v726 = vsel %vm421, %v721, %v725
      %v728 = vshrl.u32 %v635, 16
      %v730 = vshll.u32 %v635, 16
      %v732 = vrot.slane %v730, 1
      %v733 = vor.u32 %v728, %v732
      %v735 = vshll.u32 %v675, 16
      %v737 = vrot.slane %v735, 1
      %v738 = vsel %vm421, %v733, %v737
      %v740 = vshrl.u32 %v636, 16
      %v742 = vshll.u32 %v636, 16
      %v744 = vrot.slane %v742, 1
      %v745 = vor.u32 %v740, %v744
      %v747 = vshll.u32 %v676, 16
      %v749 = vrot.slane %v747, 1
      %v750 = vsel %vm421, %v745, %v749
      %v752 = vshrl.u32 %v637, 16
      %v754 = vshll.u32 %v637, 16
      %v756 = vrot.slane %v754, 1
      %v757 = vor.u32 %v752, %v756
      %v759 = vshll.u32 %v677, 16
      %v761 = vrot.slane %v759, 1
      %v762 = vsel %vm421, %v757, %v761
      %v764 = vshrl.u32 %v638, 16
      %v766 = vshll.u32 %v638, 16
      %v768 = vrot.slane %v766, 1
      %v769 = vor.u32 %v764, %v768
      %v771 = vshll.u32 %v678, 16
      %v773 = vrot.slane %v771, 1
      %v774 = vsel %vm421, %v769, %v773
      %775 = vrot.lane.b32.xlu0 %v690, 32
      %v776 = vpop.permute.xlu0 %775
      %777 = vrot.lane.b32.xlu0 %v702, 32
      %v778 = vpop.permute.xlu0 %777
      %779 = vrot.lane.b32.xlu0 %v714, 32
      %v780 = vpop.permute.xlu0 %779
      %781 = vrot.lane.b32.xlu0 %v726, 32
      %v782 = vpop.permute.xlu0 %781
      %783 = vrot.lane.b32.xlu0 %v738, 32
      %v784 = vpop.permute.xlu0 %783
      %785 = vrot.lane.b32.xlu0 %v750, 32
      %v786 = vpop.permute.xlu0 %785
      %787 = vrot.lane.b32.xlu0 %v762, 32
      %v788 = vpop.permute.xlu0 %787
      %789 = vrot.lane.b32.xlu0 %v774, 32
      %v790 = vpop.permute.xlu0 %789
      %v799 = vunpack.c.l.b16 %v316
      %v800 = vunpack.c.l.b16 %v317
      %v801 = vunpack.c.l.b16 %v318
      %v802 = vunpack.c.l.b16 %v319
      %v803 = vunpack.c.l.b16 %v320
      %v804 = vunpack.c.l.b16 %v321
      %v805 = vunpack.c.l.b16 %v322
      %v806 = vunpack.c.l.b16 %v323
      %v807 = vpack.c.b16 %v616, %v799
      %v808 = vpack.c.b16 %v618, %v800
      %v809 = vpack.c.b16 %v620, %v801
      %v810 = vpack.c.b16 %v622, %v802
      %v811 = vpack.c.b16 %v624, %v803
      %v812 = vpack.c.b16 %v626, %v804
      %v813 = vpack.c.b16 %v628, %v805
      %v814 = vpack.c.b16 %v630, %v806
      %v815 = vrot.slane %v807, 1
      %v816 = vrot.slane %v671, 1
      %v817 = vsel %vm558, %v815, %v816
      %v818 = vrot.slane %v808, 1
      %v819 = vrot.slane %v672, 1
      %v820 = vsel %vm558, %v818, %v819
      %v821 = vrot.slane %v809, 1
      %v822 = vrot.slane %v673, 1
      %v823 = vsel %vm558, %v821, %v822
      %v824 = vrot.slane %v810, 1
      %v825 = vrot.slane %v674, 1
      %v826 = vsel %vm558, %v824, %v825
      %v827 = vrot.slane %v811, 1
      %v828 = vrot.slane %v675, 1
      %v829 = vsel %vm558, %v827, %v828
      %v830 = vrot.slane %v812, 1
      %v831 = vrot.slane %v676, 1
      %v832 = vsel %vm558, %v830, %v831
      %v833 = vrot.slane %v813, 1
      %v834 = vrot.slane %v677, 1
      %v835 = vsel %vm558, %v833, %v834
      %v836 = vrot.slane %v814, 1
      %v837 = vrot.slane %v678, 1
      %v838 = vsel %vm558, %v836, %v837
      %839 = vrot.lane.b32.xlu0 %v817, 40
      %v840 = vpop.permute.xlu0 %839
      %841 = vrot.lane.b32.xlu0 %v820, 40
      %v842 = vpop.permute.xlu0 %841
      %843 = vrot.lane.b32.xlu0 %v823, 40
      %v844 = vpop.permute.xlu0 %843
      %845 = vrot.lane.b32.xlu0 %v826, 40
      %v846 = vpop.permute.xlu0 %845
      %847 = vrot.lane.b32.xlu0 %v829, 40
      %v848 = vpop.permute.xlu0 %847
      %849 = vrot.lane.b32.xlu0 %v832, 40
      %v850 = vpop.permute.xlu0 %849
      %851 = vrot.lane.b32.xlu0 %v835, 40
      %v852 = vpop.permute.xlu0 %851
      %853 = vrot.lane.b32.xlu0 %v838, 40
      %v854 = vpop.permute.xlu0 %853
      %v871 = vunpack.c.l.b16 %v325
      %v872 = vunpack.c.l.b16 %v326
      %v873 = vunpack.c.l.b16 %v327
      %v874 = vunpack.c.l.b16 %v328
      %v875 = vunpack.c.l.b16 %v329
      %v876 = vunpack.c.l.b16 %v330
      %v877 = vunpack.c.l.b16 %v331
      %v878 = vunpack.c.l.b16 %v332
      %v879 = vunpack.c.l.b16 %v333
      %v880 = vunpack.c.l.b16 %v334
      %v881 = vunpack.c.l.b16 %v335
      %v882 = vunpack.c.l.b16 %v336
      %v883 = vunpack.c.l.b16 %v337
      %v884 = vunpack.c.l.b16 %v338
      %v885 = vunpack.c.l.b16 %v339
      %v886 = vunpack.c.l.b16 %v340
      %v887 = vpack.c.b16 %v872, %v871
      %v888 = vpack.c.b16 %v874, %v873
      %v889 = vpack.c.b16 %v876, %v875
      %v890 = vpack.c.b16 %v878, %v877
      %v891 = vpack.c.b16 %v880, %v879
      %v892 = vpack.c.b16 %v882, %v881
      %v893 = vpack.c.b16 %v884, %v883
      %v894 = vpack.c.b16 %v886, %v885
      %895 = vrot.lane.b32.xlu0 %v887, 48
      %v896 = vpop.permute.xlu0 %895
      %897 = vrot.lane.b32.xlu0 %v888, 48
      %v898 = vpop.permute.xlu0 %897
      %899 = vrot.lane.b32.xlu0 %v889, 48
      %v900 = vpop.permute.xlu0 %899
      %901 = vrot.lane.b32.xlu0 %v890, 48
      %v902 = vpop.permute.xlu0 %901
      %903 = vrot.lane.b32.xlu0 %v891, 48
      %v904 = vpop.permute.xlu0 %903
      %905 = vrot.lane.b32.xlu0 %v892, 48
      %v906 = vpop.permute.xlu0 %905
      %907 = vrot.lane.b32.xlu0 %v893, 48
      %v908 = vpop.permute.xlu0 %907
      %909 = vrot.lane.b32.xlu0 %v894, 48
      %v910 = vpop.permute.xlu0 %909
      %v919 = vunpack.c.l.b16 %v341
      %v920 = vunpack.c.l.b16 %v342
      %v921 = vunpack.c.l.b16 %v343
      %v922 = vunpack.c.l.b16 %v344
      %v923 = vunpack.c.l.b16 %v345
      %v924 = vunpack.c.l.b16 %v346
      %v925 = vunpack.c.l.b16 %v347
      %v926 = vunpack.c.l.b16 %v348
      %v927 = vpack.c.b16 %v919, %v919
      %v928 = vpack.c.b16 %v920, %v920
      %v929 = vpack.c.b16 %v921, %v921
      %v930 = vpack.c.b16 %v922, %v922
      %v931 = vpack.c.b16 %v923, %v923
      %v932 = vpack.c.b16 %v924, %v924
      %v933 = vpack.c.b16 %v925, %v925
      %v934 = vpack.c.b16 %v926, %v926
      %v936 = vshrl.u32 %v887, 16
      %v938 = vshll.u32 %v887, 16
      %v940 = vrot.slane %v938, 1
      %v941 = vor.u32 %v936, %v940
      %v943 = vshll.u32 %v927, 16
      %v945 = vrot.slane %v943, 1
      %v946 = vsel %vm421, %v941, %v945
      %v948 = vshrl.u32 %v888, 16
      %v950 = vshll.u32 %v888, 16
      %v952 = vrot.slane %v950, 1
      %v953 = vor.u32 %v948, %v952
      %v955 = vshll.u32 %v928, 16
      %v957 = vrot.slane %v955, 1
      %v958 = vsel %vm421, %v953, %v957
      %v960 = vshrl.u32 %v889, 16
      %v962 = vshll.u32 %v889, 16
      %v964 = vrot.slane %v962, 1
      %v965 = vor.u32 %v960, %v964
      %v967 = vshll.u32 %v929, 16
      %v969 = vrot.slane %v967, 1
      %v970 = vsel %vm421, %v965, %v969
      %v972 = vshrl.u32 %v890, 16
      %v974 = vshll.u32 %v890, 16
      %v976 = vrot.slane %v974, 1
      %v977 = vor.u32 %v972, %v976
      %v979 = vshll.u32 %v930, 16
      %v981 = vrot.slane %v979, 1
      %v982 = vsel %vm421, %v977, %v981
      %v984 = vshrl.u32 %v891, 16
      %v986 = vshll.u32 %v891, 16
      %v988 = vrot.slane %v986, 1
      %v989 = vor.u32 %v984, %v988
      %v991 = vshll.u32 %v931, 16
      %v993 = vrot.slane %v991, 1
      %v994 = vsel %vm421, %v989, %v993
      %v996 = vshrl.u32 %v892, 16
      %v998 = vshll.u32 %v892, 16
      %v1000 = vrot.slane %v998, 1
      %v1001 = vor.u32 %v996, %v1000
      %v1003 = vshll.u32 %v932, 16
      %v1005 = vrot.slane %v1003, 1
      %v1006 = vsel %vm421, %v1001, %v1005
      %v1008 = vshrl.u32 %v893, 16
      %v1010 = vshll.u32 %v893, 16
      %v1012 = vrot.slane %v1010, 1
      %v1013 = vor.u32 %v1008, %v1012
      %v1015 = vshll.u32 %v933, 16
      %v1017 = vrot.slane %v1015, 1
      %v1018 = vsel %vm421, %v1013, %v1017
      %v1020 = vshrl.u32 %v894, 16
      %v1022 = vshll.u32 %v894, 16
      %v1024 = vrot.slane %v1022, 1
      %v1025 = vor.u32 %v1020, %v1024
      %v1027 = vshll.u32 %v934, 16
      %v1029 = vrot.slane %v1027, 1
      %v1030 = vsel %vm421, %v1025, %v1029
      %1031 = vrot.lane.b32.xlu0 %v946, 56
      %v1032 = vpop.permute.xlu0 %1031
      %1033 = vrot.lane.b32.xlu0 %v958, 56
      %v1034 = vpop.permute.xlu0 %1033
      %1035 = vrot.lane.b32.xlu0 %v970, 56
      %v1036 = vpop.permute.xlu0 %1035
      %1037 = vrot.lane.b32.xlu0 %v982, 56
      %v1038 = vpop.permute.xlu0 %1037
      %1039 = vrot.lane.b32.xlu0 %v994, 56
      %v1040 = vpop.permute.xlu0 %1039
      %1041 = vrot.lane.b32.xlu0 %v1006, 56
      %v1042 = vpop.permute.xlu0 %1041
      %1043 = vrot.lane.b32.xlu0 %v1018, 56
      %v1044 = vpop.permute.xlu0 %1043
      %1045 = vrot.lane.b32.xlu0 %v1030, 56
      %v1046 = vpop.permute.xlu0 %1045
      %v1055 = vunpack.c.l.b16 %v349
      %v1056 = vunpack.c.l.b16 %v350
      %v1057 = vunpack.c.l.b16 %v351
      %v1058 = vunpack.c.l.b16 %v352
      %v1059 = vunpack.c.l.b16 %v353
      %v1060 = vunpack.c.l.b16 %v354
      %v1061 = vunpack.c.l.b16 %v355
      %v1062 = vunpack.c.l.b16 %v356
      %v1063 = vpack.c.b16 %v872, %v1055
      %v1064 = vpack.c.b16 %v874, %v1056
      %v1065 = vpack.c.b16 %v876, %v1057
      %v1066 = vpack.c.b16 %v878, %v1058
      %v1067 = vpack.c.b16 %v880, %v1059
      %v1068 = vpack.c.b16 %v882, %v1060
      %v1069 = vpack.c.b16 %v884, %v1061
      %v1070 = vpack.c.b16 %v886, %v1062
      %v1071 = vrot.slane %v1063, 1
      %v1072 = vrot.slane %v927, 1
      %v1073 = vsel %vm558, %v1071, %v1072
      %v1074 = vrot.slane %v1064, 1
      %v1075 = vrot.slane %v928, 1
      %v1076 = vsel %vm558, %v1074, %v1075
      %v1077 = vrot.slane %v1065, 1
      %v1078 = vrot.slane %v929, 1
      %v1079 = vsel %vm558, %v1077, %v1078
      %v1080 = vrot.slane %v1066, 1
      %v1081 = vrot.slane %v930, 1
      %v1082 = vsel %vm558, %v1080, %v1081
      %v1083 = vrot.slane %v1067, 1
      %v1084 = vrot.slane %v931, 1
      %v1085 = vsel %vm558, %v1083, %v1084
      %v1086 = vrot.slane %v1068, 1
      %v1087 = vrot.slane %v932, 1
      %v1088 = vsel %vm558, %v1086, %v1087
      %v1089 = vrot.slane %v1069, 1
      %v1090 = vrot.slane %v933, 1
      %v1091 = vsel %vm558, %v1089, %v1090
      %v1092 = vrot.slane %v1070, 1
      %v1093 = vrot.slane %v934, 1
      %v1094 = vsel %vm558, %v1092, %v1093
      %1095 = vrot.lane.b32.xlu0 %v1073, 64
      %v1096 = vpop.permute.xlu0 %1095
      %1097 = vrot.lane.b32.xlu0 %v1076, 64
      %v1098 = vpop.permute.xlu0 %1097
      %1099 = vrot.lane.b32.xlu0 %v1079, 64
      %v1100 = vpop.permute.xlu0 %1099
      %1101 = vrot.lane.b32.xlu0 %v1082, 64
      %v1102 = vpop.permute.xlu0 %1101
      %1103 = vrot.lane.b32.xlu0 %v1085, 64
      %v1104 = vpop.permute.xlu0 %1103
      %1105 = vrot.lane.b32.xlu0 %v1088, 64
      %v1106 = vpop.permute.xlu0 %1105
      %1107 = vrot.lane.b32.xlu0 %v1091, 64
      %v1108 = vpop.permute.xlu0 %1107
      %1109 = vrot.lane.b32.xlu0 %v1094, 64
      %v1110 = vpop.permute.xlu0 %1109
      %vm1111 = vcmask 64512
      %v1113 = vsel %vm1111, %v389, %v519
      %v1115 = vsel %vm1111, %v390, %v521
      %v1117 = vsel %vm1111, %v391, %v523
      %v1119 = vsel %vm1111, %v392, %v525
      %v1121 = vsel %vm1111, %v393, %v527
      %v1123 = vsel %vm1111, %v394, %v529
      %v1125 = vsel %vm1111, %v395, %v531
      %v1127 = vsel %vm1111, %v396, %v533
      %vm1128 = vcmask 130048
      %v1130 = vsel %vm1128, %v1113, %v584
      %v1132 = vsel %vm1128, %v1115, %v586
      %v1134 = vsel %vm1128, %v1117, %v588
      %v1136 = vsel %vm1128, %v1119, %v590
      %v1138 = vsel %vm1128, %v1121, %v592
      %v1140 = vsel %vm1128, %v1123, %v594
      %v1142 = vsel %vm1128, %v1125, %v596
      %v1144 = vsel %vm1128, %v1127, %v598
      %vm1145 = vcmask 195584
      %v1147 = vsel %vm1145, %v1130, %v640
      %v1149 = vsel %vm1145, %v1132, %v642
      %v1151 = vsel %vm1145, %v1134, %v644
      %v1153 = vsel %vm1145, %v1136, %v646
      %v1155 = vsel %vm1145, %v1138, %v648
      %v1157 = vsel %vm1145, %v1140, %v650
      %v1159 = vsel %vm1145, %v1142, %v652
      %v1161 = vsel %vm1145, %v1144, %v654
      %vm1162 = vcmask 261120
      %v1164 = vsel %vm1162, %v1147, %v776
      %v1166 = vsel %vm1162, %v1149, %v778
      %v1168 = vsel %vm1162, %v1151, %v780
      %v1170 = vsel %vm1162, %v1153, %v782
      %v1172 = vsel %vm1162, %v1155, %v784
      %v1174 = vsel %vm1162, %v1157, %v786
      %v1176 = vsel %vm1162, %v1159, %v788
      %v1178 = vsel %vm1162, %v1161, %v790
      %vm1179 = vcmask 326656
      %v1181 = vsel %vm1179, %v1164, %v840
      %v1183 = vsel %vm1179, %v1166, %v842
      %v1185 = vsel %vm1179, %v1168, %v844
      %v1187 = vsel %vm1179, %v1170, %v846
      %v1189 = vsel %vm1179, %v1172, %v848
      %v1191 = vsel %vm1179, %v1174, %v850
      %v1193 = vsel %vm1179, %v1176, %v852
      %v1195 = vsel %vm1179, %v1178, %v854
      %vm1196 = vcmask 392192
      %v1198 = vsel %vm1196, %v1181, %v896
      %v1200 = vsel %vm1196, %v1183, %v898
      %v1202 = vsel %vm1196, %v1185, %v900
      %v1204 = vsel %vm1196, %v1187, %v902
      %v1206 = vsel %vm1196, %v1189, %v904
      %v1208 = vsel %vm1196, %v1191, %v906
      %v1210 = vsel %vm1196, %v1193, %v908
      %v1212 = vsel %vm1196, %v1195, %v910
      %vm1213 = vcmask 457728
      %v1215 = vsel %vm1213, %v1198, %v1032
      %v1217 = vsel %vm1213, %v1200, %v1034
      %v1219 = vsel %vm1213, %v1202, %v1036
      %v1221 = vsel %vm1213, %v1204, %v1038
      %v1223 = vsel %vm1213, %v1206, %v1040
      %v1225 = vsel %vm1213, %v1208, %v1042
      %v1227 = vsel %vm1213, %v1210, %v1044
      %v1229 = vsel %vm1213, %v1212, %v1046
      %vm1230 = vcmask 523264
      %v1232 = vsel %vm1230, %v1215, %v1096
      %v1234 = vsel %vm1230, %v1217, %v1098
      %v1236 = vsel %vm1230, %v1219, %v1100
      %v1238 = vsel %vm1230, %v1221, %v1102
      %v1240 = vsel %vm1230, %v1223, %v1104
      %v1242 = vsel %vm1230, %v1225, %v1106
      %v1244 = vsel %vm1230, %v1227, %v1108
      %v1246 = vsel %vm1230, %v1229, %v1110
      %v1247 = vld [vmem:[%s1] sm:$0xf]
      %v1248 = vld [vmem:[%s1 + $0x4] sm:$0xf]
      %v1249 = vld [vmem:[%s1 + $0x8] sm:$0xf]
      %v1250 = vld [vmem:[%s1 + $0xc] sm:$0xf]
      %v1251 = vld [vmem:[%s1 + $0x10] sm:$0xf]
      %v1252 = vld [vmem:[%s1 + $0x14] sm:$0xf]
      %v1253 = vld [vmem:[%s1 + $0x18] sm:$0xf]
      %v1254 = vld [vmem:[%s1 + $0x1c] sm:$0xf]
      %v1255 = vld [vmem:[%s1 + $0x20] sm:$0xf]
      %v1256 = vld [vmem:[%s2] sm:$0x1]
      %v1258 = vlaneseq
      %v1259 = vshrl.u32 %v1258, 7
      %v1260 = vsub.s32 0, %v1259
      %v1261 = vrot.slane %v1256, %v1260
      %v1272 = vunpack.c.l.b16 %v1247
      %v1273 = vunpack.c.l.b16 %v1248
      %v1274 = vunpack.c.l.b16 %v1249
      %v1275 = vunpack.c.l.b16 %v1250
      %v1276 = vunpack.c.l.b16 %v1251
      %v1277 = vunpack.c.l.b16 %v1252
      %v1278 = vunpack.c.l.b16 %v1253
      %v1279 = vunpack.c.l.b16 %v1254
      %v1280 = vunpack.c.l.b16 %v1255
      %v1281 = vpack.c.b16 %v1273, %v1272
      %v1282 = vpack.c.b16 %v1275, %v1274
      %v1283 = vpack.c.b16 %v1277, %v1276
      %v1284 = vpack.c.b16 %v1279, %v1278
      %v1285 = vpack.c.b16 %v1280, %v1280
      %vm1290 = vcmask 588800
      %v1291 = vsel %vm1290, %v1232, 0
      %v1293 = vsel %vm1290, %v1234, 0
      %v1295 = vsel %vm1290, %v1236, 0
      %v1297 = vsel %vm1290, %v1238, 0
      %v1299 = vsel %vm1290, %v1240, 0
      %v1301 = vsel %vm1290, %v1242, 0
      %v1303 = vsel %vm1290, %v1244, 0
      %v1305 = vsel %vm1290, %v1246, 0
      %vm1307 = vcmask 1043456
      %v1309 = vsel %vm1307, %v1285, 0
      %1311 = vmatprep.subr.bf16.mxu0 0
      %1312 = vmatpush1.bf16.msra.mxu0 %v1281
      %1313 = vmatprep.subr.bf16.mxu0 0
      %1314 = vmatpush1.bf16.msra.mxu0 %v1282
      %1315 = vmatprep.subr.bf16.mxu0 0
      %1316 = vmatpush1.bf16.msra.mxu0 %v1283
      %1317 = vmatprep.subr.bf16.mxu0 0
      %1318 = vmatpush1.bf16.msra.mxu0 %v1284
      %1319 = vmatprep.subr.bf16.mxu0 0
      %1320 = vmatpush1.bf16.msra.mxu0 %v1309
      %1321 = vmatprep.subr.bf16.mxu0 0
      %1322 = vmatpush1.bf16.msra.mxu0 0
      %1323 = vmatprep.subr.bf16.mxu0 0
      %1324 = vmatpush1.bf16.msra.mxu0 0
      %1325 = vmatprep.subr.bf16.mxu0 0
      %1326 = vmatpush1.bf16.msra.mxu0 0
      %1327 = vmatprep.subr.bf16.mxu0 0
      %1328 = vmatpush1.bf16.msra.mxu0 0
      %1329 = vmatprep.subr.bf16.mxu0 0
      %1330 = vmatpush1.bf16.msra.mxu0 0
      %1331 = vmatprep.subr.bf16.mxu0 0
      %1332 = vmatpush1.bf16.msra.mxu0 0
      %1333 = vmatprep.subr.bf16.mxu0 0
      %1334 = vmatpush1.bf16.msra.mxu0 0
      %1335 = vmatprep.subr.bf16.mxu0 0
      %1336 = vmatpush1.bf16.msra.mxu0 0
      %1337 = vmatprep.subr.bf16.mxu0 0
      %1338 = vmatpush1.bf16.msra.mxu0 0
      %1339 = vmatprep.subr.bf16.mxu0 0
      %1340 = vmatpush1.bf16.msra.mxu0 0
      %1341 = vmatprep.subr.bf16.mxu0 0
      %1342 = vmatpush1.bf16.msra.mxu0 0
      %1343 = vmatprep.mubr.bf16.mxu0 0
      %1344 = vmatmul.mubr.bf16.gmra.mrb[0].mxu0 %v1291
      %v1345 = vpop.f32.mrb[0].mxu0
      %v1346 = vadd.f32 %v1261, %v1345
      %v1347 = vpop.f32.mrb[0].mxu0
      %v1348 = vpop.f32.mrb[0].mxu0
      %v1349 = vadd.f32 %v1261, %v1348
      %v1350 = vpop.f32.mrb[0].mxu0
      %1351 = vmatprep.mubr.bf16.mxu0 0
      %1352 = vmatmul.mubr.bf16.gmra.mrb[0].mxu0 %v1293
      %v1353 = vpop.f32.mrb[0].mxu0
      %v1354 = vadd.f32 %v1261, %v1353
      %v1355 = vpop.f32.mrb[0].mxu0
      %v1356 = vpop.f32.mrb[0].mxu0
      %v1357 = vadd.f32 %v1261, %v1356
      %v1358 = vpop.f32.mrb[0].mxu0
      %1359 = vmatprep.mubr.bf16.mxu0 0
      %1360 = vmatmul.mubr.bf16.gmra.mrb[0].mxu0 %v1295
      %v1361 = vpop.f32.mrb[0].mxu0
      %v1362 = vadd.f32 %v1261, %v1361
      %v1363 = vpop.f32.mrb[0].mxu0
      %v1364 = vpop.f32.mrb[0].mxu0
      %v1365 = vadd.f32 %v1261, %v1364
      %v1366 = vpop.f32.mrb[0].mxu0
      %1367 = vmatprep.mubr.bf16.mxu0 0
      %1368 = vmatmul.mubr.bf16.gmra.mrb[0].mxu0 %v1297
      %v1369 = vpop.f32.mrb[0].mxu0
      %v1370 = vadd.f32 %v1261, %v1369
      %v1371 = vpop.f32.mrb[0].mxu0
      %v1372 = vpop.f32.mrb[0].mxu0
      %v1373 = vadd.f32 %v1261, %v1372
      %v1374 = vpop.f32.mrb[0].mxu0
      %1375 = vmatprep.mubr.bf16.mxu0 0
      %1376 = vmatmul.mubr.bf16.gmra.mrb[0].mxu0 %v1299
      %v1377 = vpop.f32.mrb[0].mxu0
      %v1378 = vadd.f32 %v1261, %v1377
      %v1379 = vpop.f32.mrb[0].mxu0
      %v1380 = vpop.f32.mrb[0].mxu0
      %v1381 = vadd.f32 %v1261, %v1380
      %v1382 = vpop.f32.mrb[0].mxu0
      %1383 = vmatprep.mubr.bf16.mxu0 0
      %1384 = vmatmul.mubr.bf16.gmra.mrb[0].mxu0 %v1301
      %v1385 = vpop.f32.mrb[0].mxu0
      %v1386 = vadd.f32 %v1261, %v1385
      %v1387 = vpop.f32.mrb[0].mxu0
      %v1388 = vpop.f32.mrb[0].mxu0
      %v1389 = vadd.f32 %v1261, %v1388
      %v1390 = vpop.f32.mrb[0].mxu0
      %1391 = vmatprep.mubr.bf16.mxu0 0
      %1392 = vmatmul.mubr.bf16.gmra.mrb[0].mxu0 %v1303
      %v1393 = vpop.f32.mrb[0].mxu0
      %v1394 = vadd.f32 %v1261, %v1393
      %v1395 = vpop.f32.mrb[0].mxu0
      %v1396 = vpop.f32.mrb[0].mxu0
      %v1397 = vadd.f32 %v1261, %v1396
      %v1398 = vpop.f32.mrb[0].mxu0
      %1399 = vmatprep.mubr.bf16.mxu0 0
      %1400 = vmatmul.mubr.bf16.gmra.mrb[0].mxu0 %v1305
      %v1401 = vpop.f32.mrb[0].mxu0
      %v1402 = vadd.f32 %v1261, %v1401
      %v1403 = vpop.f32.mrb[0].mxu0
      %v1404 = vpop.f32.mrb[0].mxu0
      %v1405 = vadd.f32 %v1261, %v1404
      %v1406 = vpop.f32.mrb[0].mxu0
      %1407 = vdwg.mxu0
      %1408 = vst [vmem:[%s248] sm:$0xff] %v1346
      %1409 = vst [vmem:[%s248 + $0x8] sm:$0xff] %v1349
      %1410 = vst [vmem:[%s248 + $0x10] sm:$0xff] %v1354
      %1411 = vst [vmem:[%s248 + $0x18] sm:$0xff] %v1357
      %1412 = vst [vmem:[%s248 + $0x20] sm:$0xff] %v1362
      %1413 = vst [vmem:[%s248 + $0x28] sm:$0xff] %v1365
      %1414 = vst [vmem:[%s248 + $0x30] sm:$0xff] %v1370
      %1415 = vst [vmem:[%s248 + $0x38] sm:$0xff] %v1373
      %1416 = vst [vmem:[%s248 + $0x40] sm:$0xff] %v1378
      %1417 = vst [vmem:[%s248 + $0x48] sm:$0xff] %v1381
      %1418 = vst [vmem:[%s248 + $0x50] sm:$0xff] %v1386
      %1419 = vst [vmem:[%s248 + $0x58] sm:$0xff] %v1389
      %1420 = vst [vmem:[%s248 + $0x60] sm:$0xff] %v1394
      %1421 = vst [vmem:[%s248 + $0x68] sm:$0xff] %v1397
      %1422 = vst [vmem:[%s248 + $0x70] sm:$0xff] %v1402
      %1423 = vst [vmem:[%s248 + $0x78] sm:$0xff] %v1405
      %v1424 = vadd.f32 %v1346, %v1349
      %v1425 = vadd.f32 %v1424, %v1354
      %v1426 = vadd.f32 %v1425, %v1357
      %v1427 = vadd.f32 %v1426, %v1362
      %v1428 = vadd.f32 %v1427, %v1365
      %v1429 = vadd.f32 %v1428, %v1370
      %v1430 = vadd.f32 %v1429, %v1373
      %v1431 = vadd.f32 %v1430, %v1378
      %v1432 = vadd.f32 %v1431, %v1381
      %v1433 = vadd.f32 %v1432, %v1386
      %v1434 = vadd.f32 %v1433, %v1389
      %v1435 = vadd.f32 %v1434, %v1394
      %v1436 = vadd.f32 %v1435, %v1397
      %v1437 = vadd.f32 %v1436, %v1402
      %v1438 = vadd.f32 %v1437, %v1405
      %v1439 = vrot.slane %v1438, 4
      %v1440 = vadd.f32 %v1438, %v1439
      %v1441 = vrot.slane %v1440, 2
      %v1442 = vadd.f32 %v1440, %v1441
      %v1443 = vrot.slane %v1442, 1
      %v1444 = vadd.f32 %v1442, %v1443
      %v1445 = vmul.f32 %v1346, %v1346
      %v1446 = vmul.f32 %v1349, %v1349
      %v1447 = vmul.f32 %v1354, %v1354
      %v1448 = vmul.f32 %v1357, %v1357
      %v1449 = vmul.f32 %v1362, %v1362
      %v1450 = vmul.f32 %v1365, %v1365
      %v1451 = vmul.f32 %v1370, %v1370
      %v1452 = vmul.f32 %v1373, %v1373
      %v1453 = vmul.f32 %v1378, %v1378
      %v1454 = vmul.f32 %v1381, %v1381
      %v1455 = vmul.f32 %v1386, %v1386
      %v1456 = vmul.f32 %v1389, %v1389
      %v1457 = vmul.f32 %v1394, %v1394
      %v1458 = vmul.f32 %v1397, %v1397
      %v1459 = vmul.f32 %v1402, %v1402
      %v1460 = vmul.f32 %v1405, %v1405
      %v1461 = vadd.f32 %v1445, %v1446
      %v1462 = vadd.f32 %v1461, %v1447
      %v1463 = vadd.f32 %v1462, %v1448
      %v1464 = vadd.f32 %v1463, %v1449
      %v1465 = vadd.f32 %v1464, %v1450
      %v1466 = vadd.f32 %v1465, %v1451
      %v1467 = vadd.f32 %v1466, %v1452
      %v1468 = vadd.f32 %v1467, %v1453
      %v1469 = vadd.f32 %v1468, %v1454
      %v1470 = vadd.f32 %v1469, %v1455
      %v1471 = vadd.f32 %v1470, %v1456
      %v1472 = vadd.f32 %v1471, %v1457
      %v1473 = vadd.f32 %v1472, %v1458
      %v1474 = vadd.f32 %v1473, %v1459
      %v1475 = vadd.f32 %v1474, %v1460
      %v1476 = vrot.slane %v1475, 4
      %v1477 = vadd.f32 %v1475, %v1476
      %v1478 = vrot.slane %v1477, 2
      %v1479 = vadd.f32 %v1477, %v1478
      %v1480 = vrot.slane %v1479, 1
      %v1481 = vadd.f32 %v1479, %v1480
      %vm1482 = vcmask 1040384
      %v1483 = vsel %vm1482, %v1444, %v1481
      %1484 = vst [vmem:[%s257] sm:$0x3] %v1483
      %s1485 = smul.u32 8, %s21
      %p1486 = scmp.lt.s32.totalorder %s20, 1
      %s1487 = scalar_select %p1486, %s20, 1
      %p1488 = scmp.lt.s32.totalorder %s1485, 15
      %s1489 = scalar_select %p1488, %s1485, 15
      %s1490 = smul.addr %s1489, 2
      %s1491 = smul.addr %s1487, 32
      %s1492 = sadd.s32 %s1490, %s1491
      %s1493 = smul.addr %s1492, 8
      %s1494 = scalar_lea.vmem %s3, %s1493
      %p1495 = scmp.lt.s32.totalorder %s20, 1
      %s1496 = scalar_select %p1495, %s20, 1
      %p1497 = scmp.lt.s32.totalorder %s21, 1
      %s1498 = scalar_select %p1497, %s21, 1
      %s1499 = smul.addr %s1496, 2
      %s1500 = sadd.s32 %s1498, %s1499
      %s1501 = smul.addr %s1500, 2
      %s1502 = scalar_lea.vmem %s4, %s1501
      // Predicated region
      $region33: #{cbr2d_forward.2} parent=31 // pred_check
        %p1503 = pneg %p118
      $region34: #{cbr2d_forward.2} parent=31 // pred_check_branch
        %1505 = sbr.rel (%p1503) target = $region36
      $region35: #{cbr2d_forward.2} parent=31 // pred_region
        %s1506 = smul.u32 8, %s21
      $region36: #{cbr2d_forward.2} parent=31 // pred_fallthru
        _
      // Predicated region
      $region37: #{cbr2d_forward.2} parent=31 // pred_check
        %p1507 = pneg %p146
      $region38: #{cbr2d_forward.2} parent=31 // pred_check_branch
        %1509 = sbr.rel (%p1507) target = $region40
      $region39: #{cbr2d_forward.2} parent=31 // pred_region
        _
      $region40: #{cbr2d_forward.2} parent=31 // pred_fallthru
        _
    $region32: #{cbr2d_forward.2} parent=5 // pred_fallthru
      _
    %p1510 = scmp.le.s32.totalorder 2, %s11
    // Predicated region
    $region41: #{cbr2d_forward.2} parent=5 // pred_check
      %p1511 = pneg %p1510
    $region42: #{cbr2d_forward.2} parent=5 // pred_check_branch
      %1513 = sbr.rel (%p1511) target = $region44
    $region43: #{cbr2d_forward.2} parent=5 // pred_region
      %s1514 = ssub.s32 %s11, 2
      // Predicated region
      $region45: #{cbr2d_forward.2} parent=43 // pred_check
        %p1515 = pneg %p124
      $region46: #{cbr2d_forward.2} parent=43 // pred_check_branch
        %1517 = sbr.rel (%p1515) target = $region48
      $region47: #{cbr2d_forward.2} parent=43 // pred_region
        %s1518 = smul.u32 8, %s23
        %p1519 = scmp.lt.s32.totalorder %s22, 1
        %s1520 = scalar_select %p1519, %s22, 1
        %p1521 = scmp.lt.s32.totalorder %s1518, 15
        %s1522 = scalar_select %p1521, %s1518, 15
        %s1523 = smul.addr %s1522, 2
        %s1524 = smul.addr %s1520, 32
        %s1525 = sadd.s32 %s1523, %s1524
        %s1526 = smul.addr %s1525, 8
        %s1527 = scalar_lea.vmem %s3, %s1526
      $region48: #{cbr2d_forward.2} parent=43 // pred_fallthru
        _
      // Predicated region
      $region49: #{cbr2d_forward.2} parent=43 // pred_check
        %p1528 = pneg %p152
      $region50: #{cbr2d_forward.2} parent=43 // pred_check_branch
        %1530 = sbr.rel (%p1528) target = $region52
      $region51: #{cbr2d_forward.2} parent=43 // pred_region
        %p1531 = scmp.lt.s32.totalorder %s22, 1
        %s1532 = scalar_select %p1531, %s22, 1
        %p1533 = scmp.lt.s32.totalorder %s23, 1
        %s1534 = scalar_select %p1533, %s23, 1
        %s1535 = smul.addr %s1532, 2
        %s1536 = sadd.s32 %s1534, %s1535
        %s1537 = smul.addr %s1536, 2
        %s1538 = scalar_lea.vmem %s4, %s1537
      $region52: #{cbr2d_forward.2} parent=43 // pred_fallthru
        _
    $region44: #{cbr2d_forward.2} parent=5 // pred_fallthru
      _
  $region6: #{cbr2d_forward.2} parent=0 // loop_footer
    %s15 = sadd.s32 1, %s11
  $region7: #{cbr2d_forward.2} parent=0 // loop_footer_branch
    %10 = sbr.rel target = $region3
  $region8: #{cbr2d_forward.2} parent=0 // loop_exit
    _

</llo_original>
